<compile_context>
chip_gen: v6e
topology: v6e:2x2x1
jax: 0.10.0
libtpu: 0.0.40
codegen_flags: <defaults>
</compile_context>

<pallas_src>
import math

import jax
import jax.numpy as jnp
from jax import lax
from jax.experimental import pallas as pl
from jax.experimental.pallas import tpu as pltpu

MODEL_DTYPE = jnp.bfloat16  # mirrors `model_dtype = torch.bfloat16`


# ------------------------- fused MHA kernel body --------------------------- #
def _make_mha_kernel(num_head, head_dim, scale, has_bias):
    def kernel(*refs):
        if has_bias:
            (q_ref, k_ref, v_ref, wq_ref, bq_ref, wk_ref, wv_ref, bv_ref,
             wo_ref, bo_ref, bias_ref, o_ref) = refs
        else:
            (q_ref, k_ref, v_ref, wq_ref, bq_ref, wk_ref, wv_ref, bv_ref,
             wo_ref, bo_ref, o_ref) = refs
            bias_ref = None

        xq = q_ref[0]   # (Lq, Cq) bf16
        xk = k_ref[0]   # (Lk, Ck) bf16
        xv = v_ref[0]   # (Lk, Cv) bf16

        # --- fused projections: bf16 MXU inputs, f32 accumulation ---
        qp = jnp.dot(xq, wq_ref[...], preferred_element_type=jnp.float32)
        qp = qp + bq_ref[...].astype(jnp.float32)
        qp = (qp * scale).astype(MODEL_DTYPE)          # fold 1/sqrt(d) into q

        kp = jnp.dot(xk, wk_ref[...],                  # wk has bias=False
                     preferred_element_type=jnp.float32).astype(MODEL_DTYPE)

        vp = jnp.dot(xv, wv_ref[...], preferred_element_type=jnp.float32)
        vp = (vp + bv_ref[...].astype(jnp.float32)).astype(MODEL_DTYPE)

        # --- per-head scaled dot-product attention (softmax math in f32) ---
        ctx_heads = []
        for h in range(num_head):                       # static unrolled loop
            sl = slice(h * head_dim, (h + 1) * head_dim)
            qh, kh, vh = qp[:, sl], kp[:, sl], vp[:, sl]        # (L, d) bf16
            # q @ k^T without an explicit in-kernel transpose:
            s = lax.dot_general(qh, kh, (((1,), (1,)), ((), ())),
                                preferred_element_type=jnp.float32)  # (Lq, Lk)
            if bias_ref is not None:
                s = s + bias_ref[0]
            m = jnp.max(s, axis=-1, keepdims=True)
            p = jnp.exp(s - m)
            l = jnp.sum(p, axis=-1, keepdims=True)
            w = p * pl.reciprocal(l, approx=True)
            # TODO(synk): nonzero dropout_rate not implemented (reference
            #             default path is dropout=0 -> identity).
            ctx_heads.append(jnp.dot(w.astype(MODEL_DTYPE), vh,
                                     preferred_element_type=jnp.float32))

        # (Lq, H*d)  ==  (w @ v).permute(0, 2, 1, 3).flatten(start_dim=2)
        ctx = jnp.concatenate(ctx_heads, axis=-1).astype(MODEL_DTYPE)

        # --- output projection (single lane-dense GEMM) ---
        out = jnp.dot(ctx, wo_ref[...], preferred_element_type=jnp.float32)
        out = out + bo_ref[...].astype(jnp.float32)
        o_ref[0] = out.astype(o_ref.dtype)

    return kernel


# ------------------------- one-time parameter prep ------------------------- #
def prepare_params(raw):
    """Cast weights to bf16 and pre-transpose to (in, out) ONCE, outside the
    hot path (the PyTorch layout is (out, in))."""
    def t(w):
        return w.astype(MODEL_DTYPE).T

    def b(v):
        return v.astype(MODEL_DTYPE).reshape(1, -1)

    return dict(
        wq_t=t(raw["wq_w"]), wq_b=b(raw["wq_b"]),
        wk_t=t(raw["wk_w"]),                       # wk: bias=False
        wv_t=t(raw["wv_w"]), wv_b=b(raw["wv_b"]),
        wo_t=t(raw["wo_w"]), wo_b=b(raw["wo_b"]),
    )


# ------------------------------ forward pass ------------------------------- #
def multi_head_attention(params, q, k, v, num_head, mask=None, valid_lens=None):
    B, Lq, Cq = q.shape
    _, Lk, Ck = k.shape
    Cv = v.shape[-1]
    feature = params["wq_t"].shape[1]
    assert feature % num_head == 0
    d = feature // num_head
    scale = 1.0 / math.sqrt(d)

    q = q.astype(MODEL_DTYPE)
    k = k.astype(MODEL_DTYPE)
    v = v.astype(MODEL_DTYPE)

    # Build the additive bias only when needed (common path DMAs nothing).
    has_bias = (mask is not None) or (valid_lens is not None)
    bias = None
    if has_bias:
        bias = jnp.zeros((B, Lq, Lk), jnp.float32)
        if mask is not None:
            bias = bias + mask.astype(jnp.float32)[None, :, :]
        if valid_lens is not None:
            # Same math as the reference (which assumes Lq == Lk on this path).
            idxs = jnp.arange(Lq)[None, :]                      # (1, Lq)
            km = idxs >= valid_lens[:, None]                    # (B, Lq)
            sym = km[:, :, None] | km[:, None, :]               # (B, Lq, Lq)
            bias = bias + sym.astype(jnp.float32) * -1e9

    kernel = _make_mha_kernel(num_head, d, scale, has_bias)

    def wspec(arr):
        return pl.BlockSpec(arr.shape, lambda b: (0,) * arr.ndim)

    in_specs = [
        pl.BlockSpec((1, Lq, Cq), lambda b: (b, 0, 0)),
        pl.BlockSpec((1, Lk, Ck), lambda b: (b, 0, 0)),
        pl.BlockSpec((1, Lk, Cv), lambda b: (b, 0, 0)),
        wspec(params["wq_t"]), wspec(params["wq_b"]),
        wspec(params["wk_t"]),
        wspec(params["wv_t"]), wspec(params["wv_b"]),
        wspec(params["wo_t"]), wspec(params["wo_b"]),
    ]
    inputs = [q, k, v,
              params["wq_t"], params["wq_b"],
              params["wk_t"],
              params["wv_t"], params["wv_b"],
              params["wo_t"], params["wo_b"]]
    if has_bias:
        in_specs.append(pl.BlockSpec((1, Lq, Lk), lambda b: (b, 0, 0)))
        inputs.append(bias)

    return pl.pallas_call(
        kernel,
        out_shape=jax.ShapeDtypeStruct((B, Lq, feature), MODEL_DTYPE),
        grid=(B,),
        in_specs=in_specs,
        out_specs=pl.BlockSpec((1, Lq, feature), lambda b: (b, 0, 0)),
        compiler_params=pltpu.CompilerParams(
            dimension_semantics=("parallel",)),
    )(*inputs)


# --------------------------------- main ------------------------------------ #
if __name__ == "__main__":
    feature_size, num_head = 32, 4
    B, L = 2, 8

    key = jax.random.PRNGKey(0)
    ks = jax.random.split(key, 10)

    def init_w(k_, shape):
        return jax.random.normal(k_, shape, jnp.float32) * 0.05

    raw_params = dict(
        wq_w=init_w(ks[0], (feature_size, feature_size)),
        wq_b=init_w(ks[1], (feature_size,)),
        wk_w=init_w(ks[2], (feature_size, feature_size)),   # bias=False
        wv_w=init_w(ks[3], (feature_size, feature_size)),
        wv_b=init_w(ks[4], (feature_size,)),
        wo_w=init_w(ks[5], (feature_size, feature_size)),
        wo_b=init_w(ks[6], (feature_size,)),
    )
    params = prepare_params(raw_params)   # one-time bf16 cast + transpose

    q = jax.random.normal(ks[7], (B, L, feature_size), jnp.float32).astype(MODEL_DTYPE)
    k_in = jax.random.normal(ks[8], (B, L, feature_size), jnp.float32).astype(MODEL_DTYPE)
    v_in = jax.random.normal(ks[9], (B, L, feature_size), jnp.float32).astype(MODEL_DTYPE)

    # Default path (no mask / valid_lens): no bias tensor is built or DMA'd.
    out = multi_head_attention(params, q, k_in, v_in, num_head)
    jax.block_until_ready(out)
    assert out.shape == (B, L, feature_size), out.shape
    assert out.dtype == MODEL_DTYPE, out.dtype

    # Exercise the valid_lens (masked) path as well.
    valid_lens = jnp.array([5, 8], jnp.int32)
    out_masked = multi_head_attention(params, q, k_in, v_in, num_head,
                                      valid_lens=valid_lens)
    jax.block_until_ready(out_masked)
    assert out_masked.shape == (B, L, feature_size), out_masked.shape

    print("KERNEL_OK")
</pallas_src>

<mosaic_0001>
module attributes {stable_mosaic.version = 11 : i64} {
  func.func @kernel(%arg0: i32, %arg1: memref<1x8x32xbf16, #tpu.memory_space<vmem>>, %arg2: memref<1x8x32xbf16, #tpu.memory_space<vmem>>, %arg3: memref<1x8x32xbf16, #tpu.memory_space<vmem>>, %arg4: memref<32x32xbf16, #tpu.memory_space<vmem>>, %arg5: memref<1x32xbf16, #tpu.memory_space<vmem>>, %arg6: memref<32x32xbf16, #tpu.memory_space<vmem>>, %arg7: memref<32x32xbf16, #tpu.memory_space<vmem>>, %arg8: memref<1x32xbf16, #tpu.memory_space<vmem>>, %arg9: memref<32x32xbf16, #tpu.memory_space<vmem>>, %arg10: memref<1x32xbf16, #tpu.memory_space<vmem>>, %arg11: memref<1x8x32xbf16, #tpu.memory_space<vmem>>) attributes {dimension_semantics = [#tpu.dimension_semantics<parallel>], iteration_bounds = array<i64: 2>, scalar_prefetch = 0 : i64, scratch_operands = 0 : i64, tpu.core_type = #tpu.core_type<tc>, window_params = [{transform_indices = @transform_0, window_bounds = array<i64: 1, 8, 32>}, {transform_indices = @transform_1, window_bounds = array<i64: 1, 8, 32>}, {transform_indices = @transform_2, window_bounds = array<i64: 1, 8, 32>}, {pipeline_mode = #tpu.pipeline_mode<synchronous>, transform_indices = @transform_3, window_bounds = array<i64: 32, 32>}, {pipeline_mode = #tpu.pipeline_mode<synchronous>, transform_indices = @transform_4, window_bounds = array<i64: 1, 32>}, {pipeline_mode = #tpu.pipeline_mode<synchronous>, transform_indices = @transform_5, window_bounds = array<i64: 32, 32>}, {pipeline_mode = #tpu.pipeline_mode<synchronous>, transform_indices = @transform_6, window_bounds = array<i64: 32, 32>}, {pipeline_mode = #tpu.pipeline_mode<synchronous>, transform_indices = @transform_7, window_bounds = array<i64: 1, 32>}, {pipeline_mode = #tpu.pipeline_mode<synchronous>, transform_indices = @transform_8, window_bounds = array<i64: 32, 32>}, {pipeline_mode = #tpu.pipeline_mode<synchronous>, transform_indices = @transform_9, window_bounds = array<i64: 1, 32>}, {transform_indices = @transform_10, window_bounds = array<i64: 1, 8, 32>}]} {
    %c0 = arith.constant 0 : index
    %c0_0 = arith.constant 0 : index
    %c0_1 = arith.constant 0 : index
    %0 = vector.load %arg1[%c0, %c0_0, %c0_1] : memref<1x8x32xbf16, #tpu.memory_space<vmem>>, vector<1x8x32xbf16>
    %1 = vector.shape_cast %0 : vector<1x8x32xbf16> to vector<8x32xbf16>
    %c0_2 = arith.constant 0 : index
    %c0_3 = arith.constant 0 : index
    %c0_4 = arith.constant 0 : index
    %2 = vector.load %arg2[%c0_2, %c0_3, %c0_4] : memref<1x8x32xbf16, #tpu.memory_space<vmem>>, vector<1x8x32xbf16>
    %3 = vector.shape_cast %2 : vector<1x8x32xbf16> to vector<8x32xbf16>
    %c0_5 = arith.constant 0 : index
    %c0_6 = arith.constant 0 : index
    %c0_7 = arith.constant 0 : index
    %4 = vector.load %arg3[%c0_5, %c0_6, %c0_7] : memref<1x8x32xbf16, #tpu.memory_space<vmem>>, vector<1x8x32xbf16>
    %5 = vector.shape_cast %4 : vector<1x8x32xbf16> to vector<8x32xbf16>
    %c0_8 = arith.constant 0 : index
    %c0_9 = arith.constant 0 : index
    %6 = vector.load %arg4[%c0_8, %c0_9] : memref<32x32xbf16, #tpu.memory_space<vmem>>, vector<32x32xbf16>
    %cst = arith.constant dense<0.000000e+00> : vector<8x32xf32>
    %7 = tpu.matmul %1, %6, %cst {dimension_numbers = #tpu.dot_dimension_numbers<[1], [0], [0], [1], [0, 0, 1, 1], [], []>} : vector<8x32xbf16>, vector<32x32xbf16>, vector<8x32xf32> -> vector<8x32xf32>
    %c0_10 = arith.constant 0 : index
    %c0_11 = arith.constant 0 : index
    %8 = vector.load %arg5[%c0_10, %c0_11] : memref<1x32xbf16, #tpu.memory_space<vmem>>, vector<1x32xbf16>
    %9 = arith.extf %8 : vector<1x32xbf16> to vector<1x32xf32>
    %10 = vector.broadcast %9 : vector<1x32xf32> to vector<8x32xf32>
    %11 = arith.addf %7, %10 : vector<8x32xf32>
    %cst_12 = arith.constant 0.353553385 : f32
    %12 = vector.broadcast %cst_12 : f32 to vector<8x32xf32>
    %13 = arith.mulf %11, %12 : vector<8x32xf32>
    %14 = arith.truncf %13 : vector<8x32xf32> to vector<8x32xbf16>
    %c0_13 = arith.constant 0 : index
    %c0_14 = arith.constant 0 : index
    %15 = vector.load %arg6[%c0_13, %c0_14] : memref<32x32xbf16, #tpu.memory_space<vmem>>, vector<32x32xbf16>
    %cst_15 = arith.constant dense<0.000000e+00> : vector<8x32xf32>
    %16 = tpu.matmul %3, %15, %cst_15 {dimension_numbers = #tpu.dot_dimension_numbers<[1], [0], [0], [1], [0, 0, 1, 1], [], []>} : vector<8x32xbf16>, vector<32x32xbf16>, vector<8x32xf32> -> vector<8x32xf32>
    %17 = arith.truncf %16 : vector<8x32xf32> to vector<8x32xbf16>
    %c0_16 = arith.constant 0 : index
    %c0_17 = arith.constant 0 : index
    %18 = vector.load %arg7[%c0_16, %c0_17] : memref<32x32xbf16, #tpu.memory_space<vmem>>, vector<32x32xbf16>
    %cst_18 = arith.constant dense<0.000000e+00> : vector<8x32xf32>
    %19 = tpu.matmul %5, %18, %cst_18 {dimension_numbers = #tpu.dot_dimension_numbers<[1], [0], [0], [1], [0, 0, 1, 1], [], []>} : vector<8x32xbf16>, vector<32x32xbf16>, vector<8x32xf32> -> vector<8x32xf32>
    %c0_19 = arith.constant 0 : index
    %c0_20 = arith.constant 0 : index
    %20 = vector.load %arg8[%c0_19, %c0_20] : memref<1x32xbf16, #tpu.memory_space<vmem>>, vector<1x32xbf16>
    %21 = arith.extf %20 : vector<1x32xbf16> to vector<1x32xf32>
    %22 = vector.broadcast %21 : vector<1x32xf32> to vector<8x32xf32>
    %23 = arith.addf %19, %22 : vector<8x32xf32>
    %24 = arith.truncf %23 : vector<8x32xf32> to vector<8x32xbf16>
    %25 = vector.extract_strided_slice %14 {offsets = [0, 0], sizes = [8, 8], strides = [1, 1]} : vector<8x32xbf16> to vector<8x8xbf16>
    %26 = vector.extract_strided_slice %17 {offsets = [0, 0], sizes = [8, 8], strides = [1, 1]} : vector<8x32xbf16> to vector<8x8xbf16>
    %27 = vector.extract_strided_slice %24 {offsets = [0, 0], sizes = [8, 8], strides = [1, 1]} : vector<8x32xbf16> to vector<8x8xbf16>
    %cst_21 = arith.constant dense<0.000000e+00> : vector<8x8xf32>
    %28 = tpu.matmul %25, %26, %cst_21 {dimension_numbers = #tpu.dot_dimension_numbers<[1], [1], [0], [0], [0, 0, 1, 0], [], []>} : vector<8x8xbf16>, vector<8x8xbf16>, vector<8x8xf32> -> vector<8x8xf32>
    %cst_22 = arith.constant dense<0xFF800000> : vector<8xf32>
    %29 = vector.multi_reduction <maximumf>, %28, %cst_22 [1] : vector<8x8xf32> to vector<8xf32>
    %30 = vector.shape_cast %29 : vector<8xf32> to vector<8x1xf32>
    %31 = vector.broadcast %30 : vector<8x1xf32> to vector<8x8xf32>
    %32 = arith.subf %28, %31 : vector<8x8xf32>
    %33 = math.exp %32 : vector<8x8xf32>
    %cst_23 = arith.constant dense<0.000000e+00> : vector<8xf32>
    %34 = vector.multi_reduction <add>, %33, %cst_23 [1] : vector<8x8xf32> to vector<8xf32>
    %35 = vector.shape_cast %34 : vector<8xf32> to vector<8x1xf32>
    %36 = tpu.reciprocal %35 {approx = true} : vector<8x1xf32> -> vector<8x1xf32>
    %37 = vector.broadcast %36 : vector<8x1xf32> to vector<8x8xf32>
    %38 = arith.mulf %33, %37 : vector<8x8xf32>
    %39 = arith.truncf %38 : vector<8x8xf32> to vector<8x8xbf16>
    %cst_24 = arith.constant dense<0.000000e+00> : vector<8x8xf32>
    %40 = tpu.matmul %39, %27, %cst_24 {dimension_numbers = #tpu.dot_dimension_numbers<[1], [0], [0], [1], [0, 0, 1, 1], [], []>} : vector<8x8xbf16>, vector<8x8xbf16>, vector<8x8xf32> -> vector<8x8xf32>
    %41 = vector.extract_strided_slice %14 {offsets = [0, 8], sizes = [8, 8], strides = [1, 1]} : vector<8x32xbf16> to vector<8x8xbf16>
    %42 = vector.extract_strided_slice %17 {offsets = [0, 8], sizes = [8, 8], strides = [1, 1]} : vector<8x32xbf16> to vector<8x8xbf16>
    %43 = vector.extract_strided_slice %24 {offsets = [0, 8], sizes = [8, 8], strides = [1, 1]} : vector<8x32xbf16> to vector<8x8xbf16>
    %cst_25 = arith.constant dense<0.000000e+00> : vector<8x8xf32>
    %44 = tpu.matmul %41, %42, %cst_25 {dimension_numbers = #tpu.dot_dimension_numbers<[1], [1], [0], [0], [0, 0, 1, 0], [], []>} : vector<8x8xbf16>, vector<8x8xbf16>, vector<8x8xf32> -> vector<8x8xf32>
    %cst_26 = arith.constant dense<0xFF800000> : vector<8xf32>
    %45 = vector.multi_reduction <maximumf>, %44, %cst_26 [1] : vector<8x8xf32> to vector<8xf32>
    %46 = vector.shape_cast %45 : vector<8xf32> to vector<8x1xf32>
    %47 = vector.broadcast %46 : vector<8x1xf32> to vector<8x8xf32>
    %48 = arith.subf %44, %47 : vector<8x8xf32>
    %49 = math.exp %48 : vector<8x8xf32>
    %cst_27 = arith.constant dense<0.000000e+00> : vector<8xf32>
    %50 = vector.multi_reduction <add>, %49, %cst_27 [1] : vector<8x8xf32> to vector<8xf32>
    %51 = vector.shape_cast %50 : vector<8xf32> to vector<8x1xf32>
    %52 = tpu.reciprocal %51 {approx = true} : vector<8x1xf32> -> vector<8x1xf32>
    %53 = vector.broadcast %52 : vector<8x1xf32> to vector<8x8xf32>
    %54 = arith.mulf %49, %53 : vector<8x8xf32>
    %55 = arith.truncf %54 : vector<8x8xf32> to vector<8x8xbf16>
    %cst_28 = arith.constant dense<0.000000e+00> : vector<8x8xf32>
    %56 = tpu.matmul %55, %43, %cst_28 {dimension_numbers = #tpu.dot_dimension_numbers<[1], [0], [0], [1], [0, 0, 1, 1], [], []>} : vector<8x8xbf16>, vector<8x8xbf16>, vector<8x8xf32> -> vector<8x8xf32>
    %57 = vector.extract_strided_slice %14 {offsets = [0, 16], sizes = [8, 8], strides = [1, 1]} : vector<8x32xbf16> to vector<8x8xbf16>
    %58 = vector.extract_strided_slice %17 {offsets = [0, 16], sizes = [8, 8], strides = [1, 1]} : vector<8x32xbf16> to vector<8x8xbf16>
    %59 = vector.extract_strided_slice %24 {offsets = [0, 16], sizes = [8, 8], strides = [1, 1]} : vector<8x32xbf16> to vector<8x8xbf16>
    %cst_29 = arith.constant dense<0.000000e+00> : vector<8x8xf32>
    %60 = tpu.matmul %57, %58, %cst_29 {dimension_numbers = #tpu.dot_dimension_numbers<[1], [1], [0], [0], [0, 0, 1, 0], [], []>} : vector<8x8xbf16>, vector<8x8xbf16>, vector<8x8xf32> -> vector<8x8xf32>
    %cst_30 = arith.constant dense<0xFF800000> : vector<8xf32>
    %61 = vector.multi_reduction <maximumf>, %60, %cst_30 [1] : vector<8x8xf32> to vector<8xf32>
    %62 = vector.shape_cast %61 : vector<8xf32> to vector<8x1xf32>
    %63 = vector.broadcast %62 : vector<8x1xf32> to vector<8x8xf32>
    %64 = arith.subf %60, %63 : vector<8x8xf32>
    %65 = math.exp %64 : vector<8x8xf32>
    %cst_31 = arith.constant dense<0.000000e+00> : vector<8xf32>
    %66 = vector.multi_reduction <add>, %65, %cst_31 [1] : vector<8x8xf32> to vector<8xf32>
    %67 = vector.shape_cast %66 : vector<8xf32> to vector<8x1xf32>
    %68 = tpu.reciprocal %67 {approx = true} : vector<8x1xf32> -> vector<8x1xf32>
    %69 = vector.broadcast %68 : vector<8x1xf32> to vector<8x8xf32>
    %70 = arith.mulf %65, %69 : vector<8x8xf32>
    %71 = arith.truncf %70 : vector<8x8xf32> to vector<8x8xbf16>
    %cst_32 = arith.constant dense<0.000000e+00> : vector<8x8xf32>
    %72 = tpu.matmul %71, %59, %cst_32 {dimension_numbers = #tpu.dot_dimension_numbers<[1], [0], [0], [1], [0, 0, 1, 1], [], []>} : vector<8x8xbf16>, vector<8x8xbf16>, vector<8x8xf32> -> vector<8x8xf32>
    %73 = vector.extract_strided_slice %14 {offsets = [0, 24], sizes = [8, 8], strides = [1, 1]} : vector<8x32xbf16> to vector<8x8xbf16>
    %74 = vector.extract_strided_slice %17 {offsets = [0, 24], sizes = [8, 8], strides = [1, 1]} : vector<8x32xbf16> to vector<8x8xbf16>
    %75 = vector.extract_strided_slice %24 {offsets = [0, 24], sizes = [8, 8], strides = [1, 1]} : vector<8x32xbf16> to vector<8x8xbf16>
    %cst_33 = arith.constant dense<0.000000e+00> : vector<8x8xf32>
    %76 = tpu.matmul %73, %74, %cst_33 {dimension_numbers = #tpu.dot_dimension_numbers<[1], [1], [0], [0], [0, 0, 1, 0], [], []>} : vector<8x8xbf16>, vector<8x8xbf16>, vector<8x8xf32> -> vector<8x8xf32>
    %cst_34 = arith.constant dense<0xFF800000> : vector<8xf32>
    %77 = vector.multi_reduction <maximumf>, %76, %cst_34 [1] : vector<8x8xf32> to vector<8xf32>
    %78 = vector.shape_cast %77 : vector<8xf32> to vector<8x1xf32>
    %79 = vector.broadcast %78 : vector<8x1xf32> to vector<8x8xf32>
    %80 = arith.subf %76, %79 : vector<8x8xf32>
    %81 = math.exp %80 : vector<8x8xf32>
    %cst_35 = arith.constant dense<0.000000e+00> : vector<8xf32>
    %82 = vector.multi_reduction <add>, %81, %cst_35 [1] : vector<8x8xf32> to vector<8xf32>
    %83 = vector.shape_cast %82 : vector<8xf32> to vector<8x1xf32>
    %84 = tpu.reciprocal %83 {approx = true} : vector<8x1xf32> -> vector<8x1xf32>
    %85 = vector.broadcast %84 : vector<8x1xf32> to vector<8x8xf32>
    %86 = arith.mulf %81, %85 : vector<8x8xf32>
    %87 = arith.truncf %86 : vector<8x8xf32> to vector<8x8xbf16>
    %cst_36 = arith.constant dense<0.000000e+00> : vector<8x8xf32>
    %88 = tpu.matmul %87, %75, %cst_36 {dimension_numbers = #tpu.dot_dimension_numbers<[1], [0], [0], [1], [0, 0, 1, 1], [], []>} : vector<8x8xbf16>, vector<8x8xbf16>, vector<8x8xf32> -> vector<8x8xf32>
    %89 = tpu.concatenate %40, %56, %72, %88 in 1 : vector<8x8xf32>, vector<8x8xf32>, vector<8x8xf32>, vector<8x8xf32> -> vector<8x32xf32>
    %90 = arith.truncf %89 : vector<8x32xf32> to vector<8x32xbf16>
    %c0_37 = arith.constant 0 : index
    %c0_38 = arith.constant 0 : index
    %91 = vector.load %arg9[%c0_37, %c0_38] : memref<32x32xbf16, #tpu.memory_space<vmem>>, vector<32x32xbf16>
    %cst_39 = arith.constant dense<0.000000e+00> : vector<8x32xf32>
    %92 = tpu.matmul %90, %91, %cst_39 {dimension_numbers = #tpu.dot_dimension_numbers<[1], [0], [0], [1], [0, 0, 1, 1], [], []>} : vector<8x32xbf16>, vector<32x32xbf16>, vector<8x32xf32> -> vector<8x32xf32>
    %c0_40 = arith.constant 0 : index
    %c0_41 = arith.constant 0 : index
    %93 = vector.load %arg10[%c0_40, %c0_41] : memref<1x32xbf16, #tpu.memory_space<vmem>>, vector<1x32xbf16>
    %94 = arith.extf %93 : vector<1x32xbf16> to vector<1x32xf32>
    %95 = vector.broadcast %94 : vector<1x32xf32> to vector<8x32xf32>
    %96 = arith.addf %92, %95 : vector<8x32xf32>
    %97 = arith.truncf %96 : vector<8x32xf32> to vector<8x32xbf16>
    %c0_42 = arith.constant 0 : index
    %c0_43 = arith.constant 0 : index
    %c0_44 = arith.constant 0 : index
    %98 = vector.load %arg11[%c0_42, %c0_43, %c0_44] : memref<1x8x32xbf16, #tpu.memory_space<vmem>>, vector<1x8x32xbf16>
    %99 = vector.shape_cast %98 : vector<1x8x32xbf16> to vector<8x32xbf16>
    %100 = vector.shape_cast %97 : vector<8x32xbf16> to vector<1x8x32xbf16>
    tpu.vector_store %arg11[%c0_42, %c0_43, %c0_44], %100 {strides = array<i32>} : memref<1x8x32xbf16, #tpu.memory_space<vmem>>, vector<1x8x32xbf16>,
    return
  }
  func.func @transform_0(%arg0: i32) -> (i32, i32, i32) {
    %c0_i32 = arith.constant 0 : i32
    %c0_i32_0 = arith.constant 0 : i32
    %c0_i32_1 = arith.constant 0 : i32
    return %arg0, %c0_i32, %c0_i32_0 : i32, i32, i32
  }
  func.func @transform_1(%arg0: i32) -> (i32, i32, i32) {
    %c0_i32 = arith.constant 0 : i32
    %c0_i32_0 = arith.constant 0 : i32
    %c0_i32_1 = arith.constant 0 : i32
    return %arg0, %c0_i32, %c0_i32_0 : i32, i32, i32
  }
  func.func @transform_2(%arg0: i32) -> (i32, i32, i32) {
    %c0_i32 = arith.constant 0 : i32
    %c0_i32_0 = arith.constant 0 : i32
    %c0_i32_1 = arith.constant 0 : i32
    return %arg0, %c0_i32, %c0_i32_0 : i32, i32, i32
  }
  func.func @transform_3(%arg0: i32) -> (i32, i32) {
    %c0_i32 = arith.constant 0 : i32
    %c0_i32_0 = arith.constant 0 : i32
    %c0_i32_1 = arith.constant 0 : i32
    return %c0_i32, %c0_i32_0 : i32, i32
  }
  func.func @transform_4(%arg0: i32) -> (i32, i32) {
    %c0_i32 = arith.constant 0 : i32
    %c0_i32_0 = arith.constant 0 : i32
    %c0_i32_1 = arith.constant 0 : i32
    return %c0_i32, %c0_i32_0 : i32, i32
  }
  func.func @transform_5(%arg0: i32) -> (i32, i32) {
    %c0_i32 = arith.constant 0 : i32
    %c0_i32_0 = arith.constant 0 : i32
    %c0_i32_1 = arith.constant 0 : i32
    return %c0_i32, %c0_i32_0 : i32, i32
  }
  func.func @transform_6(%arg0: i32) -> (i32, i32) {
    %c0_i32 = arith.constant 0 : i32
    %c0_i32_0 = arith.constant 0 : i32
    %c0_i32_1 = arith.constant 0 : i32
    return %c0_i32, %c0_i32_0 : i32, i32
  }
  func.func @transform_7(%arg0: i32) -> (i32, i32) {
    %c0_i32 = arith.constant 0 : i32
    %c0_i32_0 = arith.constant 0 : i32
    %c0_i32_1 = arith.constant 0 : i32
    return %c0_i32, %c0_i32_0 : i32, i32
  }
  func.func @transform_8(%arg0: i32) -> (i32, i32) {
    %c0_i32 = arith.constant 0 : i32
    %c0_i32_0 = arith.constant 0 : i32
    %c0_i32_1 = arith.constant 0 : i32
    return %c0_i32, %c0_i32_0 : i32, i32
  }
  func.func @transform_9(%arg0: i32) -> (i32, i32) {
    %c0_i32 = arith.constant 0 : i32
    %c0_i32_0 = arith.constant 0 : i32
    %c0_i32_1 = arith.constant 0 : i32
    return %c0_i32, %c0_i32_0 : i32, i32
  }
  func.func @transform_10(%arg0: i32) -> (i32, i32, i32) {
    %c0_i32 = arith.constant 0 : i32
    %c0_i32_0 = arith.constant 0 : i32
    %c0_i32_1 = arith.constant 0 : i32
    return %arg0, %c0_i32, %c0_i32_0 : i32, i32, i32
  }
}

</mosaic_0001>

<llo_original>
// kernel: tpu_custom_call.1
$region0: #{tpu_custom_call.1}
  #allocation0 [shape = 'u32[]', space=smem, size = 0x4, offset = 0x4, fixed_abs, tag = 'smem constant byte address 0x4 - core index']
  #allocation1 [shape = 'u32[144,128]{1,0:T(1,128)}', space=vmem, size = 0x12000, scoped, tag = 'internal scratch']
  %s0 = inlined_call_operand.hbm [shape: bf16[2,8,32], index: 0, kind: input, shape index: {}]
  %s1 = inlined_call_operand.hbm [shape: bf16[2,8,32], index: 1, kind: input, shape index: {}]
  %s2 = inlined_call_operand.hbm [shape: bf16[2,8,32], index: 2, kind: input, shape index: {}]
  %s3 = inlined_call_operand.hbm [shape: bf16[32,32], index: 3, kind: input, shape index: {}]
  %s4 = inlined_call_operand.vmem [shape: bf16[1,32], index: 4, kind: input, shape index: {}]
  %s5 = inlined_call_operand.hbm [shape: bf16[32,32], index: 5, kind: input, shape index: {}]
  %s6 = inlined_call_operand.hbm [shape: bf16[32,32], index: 6, kind: input, shape index: {}]
  %s7 = inlined_call_operand.vmem [shape: bf16[1,32], index: 7, kind: input, shape index: {}]
  %s8 = inlined_call_operand.hbm [shape: bf16[32,32], index: 8, kind: input, shape index: {}]
  %s9 = inlined_call_operand.vmem [shape: bf16[1,32], index: 9, kind: input, shape index: {}]
  %s10 = inlined_call_operand.hbm [shape: bf16[2,8,32], index: 10, kind: output, shape index: {}]
  %s11 = sld [smem:[#allocation0]]
  $region101: #{tpu_custom_call.1} parent=0
    _
  %s13 = ssub.s32 1, %s11
  %s14 = scalar_select 0, %s13, %s11
  $region1: #{tpu_custom_call.1} parent=0
    #allocation2 [shape = 'u8[4096]{0}', space=vmem, size = 0x1000, scoped, tag = 'input window, operand 0']
    #allocation3 [shape = 's32[2]{0}', space=sflag, size = 0x8, scoped, tag = 'scoped memory for tpu_custom_call.1']
    #allocation4 [shape = 's32[2]{0}', space=sflag, size = 0x8, scoped, tag = 'scoped memory for tpu_custom_call.1']
    #allocation5 [shape = 'u8[4096]{0}', space=vmem, size = 0x1000, scoped, tag = 'input window, operand 1']
    #allocation6 [shape = 's32[2]{0}', space=sflag, size = 0x8, scoped, tag = 'scoped memory for tpu_custom_call.1']
    #allocation7 [shape = 'u8[4096]{0}', space=vmem, size = 0x1000, scoped, tag = 'input window, operand 2']
    #allocation8 [shape = 'u8[8192]{0}', space=vmem, size = 0x2000, scoped, tag = 'input window, operand 3, single buffered']
    #allocation9 [shape = 's32[1]{0}', space=sflag, size = 0x4, scoped, tag = 'scoped memory for tpu_custom_call.1']
    #allocation10 [shape = 'u8[8192]{0}', space=vmem, size = 0x2000, scoped, tag = 'input window, operand 5, single buffered']
    #allocation11 [shape = 'u8[8192]{0}', space=vmem, size = 0x2000, scoped, tag = 'input window, operand 6, single buffered']
    #allocation12 [shape = 's32[1]{0}', space=sflag, size = 0x4, scoped, tag = 'scoped memory for tpu_custom_call.1']
    #allocation13 [shape = 'u8[8192]{0}', space=vmem, size = 0x2000, scoped, tag = 'input window, operand 8, single buffered']
    #allocation14 [shape = 'u8[4096]{0}', space=vmem, size = 0x1000, scoped, tag = 'output window, operand 0']
    %15 = vsyncpa [#allocation3], 0
    %s16 = scalar_lea.sflag [#allocation3], 1
    %17 = vsyncpa %s16, 0
    %18 = vsyncpa [#allocation6], 0
    %s19 = scalar_lea.sflag [#allocation6], 1
    %20 = vsyncpa %s19, 0
    %21 = vsyncpa [#allocation9], 0
    %22 = vsyncpa [#allocation12], 0
    %23 = vsyncpa [#allocation4], 0
    %s24 = scalar_lea.sflag [#allocation4], 1
    %25 = vsyncpa %s24, 0
    loop: start=0, step=1, limit=4
    $region2: #{tpu_custom_call.1} parent=1 // loop_pre_header
      _
    $region3: #{tpu_custom_call.1} parent=1 // loop_header
      %s27 = sphi 0, %s31
      %p28 = scmp.ge.s32.totalorder %s27, 4
      %s37 = sphi 0, %s39
      %s40 = sphi 0, %s37
      %s41 = sphi 0, %s40
      %s57 = sphi 0, %s41
      %s63 = sphi 0, %s65
      %s66 = sphi 0, %s63
      %s67 = sphi 0, %s66
      %s83 = sphi 0, %s67
      %s89 = sphi 0, %s91
      %s92 = sphi 0, %s89
      %s93 = sphi 0, %s92
      %s109 = sphi 0, %s93
      %s113 = sphi 0, %s113
      %s115 = sphi 0, %s113
      %s116 = sphi 0, %s115
      %s130 = sphi 0, %s116
      %s134 = sphi 0, %s134
      %s136 = sphi 0, %s134
      %s137 = sphi 0, %s136
      %s151 = sphi 0, %s137
      %s155 = sphi 0, %s155
      %s157 = sphi 0, %s155
      %s158 = sphi 0, %s157
      %s172 = sphi 0, %s158
      %s176 = sphi 0, %s176
      %s178 = sphi 0, %s176
      %s179 = sphi 0, %s178
      %s193 = sphi 0, %s179
      %s197 = sphi 0, %s197
      %s199 = sphi 0, %s197
      %s200 = sphi 0, %s199
      %s214 = sphi 0, %s200
      %s218 = sphi 0, %s218
      %s220 = sphi 0, %s218
      %s221 = sphi 0, %s220
      %s235 = sphi 0, %s221
      %s239 = sphi 0, %s239
      %s241 = sphi 0, %s239
      %s242 = sphi 0, %s241
      %s256 = sphi 0, %s242
      %s262 = sphi 0, %s264
      %s265 = sphi 0, %s262
      %s266 = sphi 0, %s265
      %s282 = sphi 0, %s266
    $region4: #{tpu_custom_call.1} parent=1 // loop_header_branch
      %30 = sbr.rel (%p28) target = $region8
    $region5: #{tpu_custom_call.1} parent=1 // loop_body
      %s32 = ssub.s32 %s27, 1
      %s33 = ssub.s32 %s27, 2
      %s34 = sadd.s32 %s27, 1
      %s35 = ssub.s32 %s27, %s34
      %p36 = scmp.eq.s32.totalorder %s35, 0
      %s38 = sadd.s32 %s37, 1
      %s39 = scalar_select %p36, %s37, %s38
      %p42 = pneg %p36
      %p43 = scmp.eq.s32.totalorder %s27, 1
      %p44 = por %p42, %p43
      %p45 = scmp.ne.s32.totalorder %s37, %s40
      %p46 = scmp.eq.s32.totalorder %s27, 0
      %p47 = por %p45, %p46
      %p48 = scmp.ne.s32.totalorder %s37, %s40
      %p49 = scmp.eq.s32.totalorder %s32, 1
      %p50 = por %p48, %p49
      %p51 = scmp.ne.s32.totalorder %s40, %s41
      %p52 = scmp.eq.s32.totalorder %s32, 0
      %p53 = por %p51, %p52
      %p54 = scmp.ne.s32.totalorder %s40, %s41
      %p55 = scmp.eq.s32.totalorder %s33, 1
      %p56 = por %p54, %p55
      %p58 = scmp.ne.s32.totalorder %s41, %s57
      %p59 = scmp.eq.s32.totalorder %s33, 0
      %p60 = por %p58, %p59
      %s61 = ssub.s32 %s27, %s34
      %p62 = scmp.eq.s32.totalorder %s61, 0
      %s64 = sadd.s32 %s63, 1
      %s65 = scalar_select %p62, %s63, %s64
      %p68 = pneg %p62
      %p69 = scmp.eq.s32.totalorder %s27, 1
      %p70 = por %p68, %p69
      %p71 = scmp.ne.s32.totalorder %s63, %s66
      %p72 = scmp.eq.s32.totalorder %s27, 0
      %p73 = por %p71, %p72
      %p74 = scmp.ne.s32.totalorder %s63, %s66
      %p75 = scmp.eq.s32.totalorder %s32, 1
      %p76 = por %p74, %p75
      %p77 = scmp.ne.s32.totalorder %s66, %s67
      %p78 = scmp.eq.s32.totalorder %s32, 0
      %p79 = por %p77, %p78
      %p80 = scmp.ne.s32.totalorder %s66, %s67
      %p81 = scmp.eq.s32.totalorder %s33, 1
      %p82 = por %p80, %p81
      %p84 = scmp.ne.s32.totalorder %s67, %s83
      %p85 = scmp.eq.s32.totalorder %s33, 0
      %p86 = por %p84, %p85
      %s87 = ssub.s32 %s27, %s34
      %p88 = scmp.eq.s32.totalorder %s87, 0
      %s90 = sadd.s32 %s89, 1
      %s91 = scalar_select %p88, %s89, %s90
      %p94 = pneg %p88
      %p95 = scmp.eq.s32.totalorder %s27, 1
      %p96 = por %p94, %p95
      %p97 = scmp.ne.s32.totalorder %s89, %s92
      %p98 = scmp.eq.s32.totalorder %s27, 0
      %p99 = por %p97, %p98
      %p100 = scmp.ne.s32.totalorder %s89, %s92
      %p101 = scmp.eq.s32.totalorder %s32, 1
      %p102 = por %p100, %p101
      %p103 = scmp.ne.s32.totalorder %s92, %s93
      %p104 = scmp.eq.s32.totalorder %s32, 0
      %p105 = por %p103, %p104
      %p106 = scmp.ne.s32.totalorder %s92, %s93
      %p107 = scmp.eq.s32.totalorder %s33, 1
      %p108 = por %p106, %p107
      %p110 = scmp.ne.s32.totalorder %s93, %s109
      %p111 = scmp.eq.s32.totalorder %s33, 0
      %p112 = por %p110, %p111
      %s114 = sadd.s32 %s113, 1
      %p117 = scmp.eq.s32.totalorder %s27, 1
      %p118 = scmp.ne.s32.totalorder %s113, %s115
      %p119 = scmp.eq.s32.totalorder %s27, 0
      %p120 = por %p118, %p119
      %p121 = scmp.ne.s32.totalorder %s113, %s115
      %p122 = scmp.eq.s32.totalorder %s32, 1
      %p123 = por %p121, %p122
      %p124 = scmp.ne.s32.totalorder %s115, %s116
      %p125 = scmp.eq.s32.totalorder %s32, 0
      %p126 = por %p124, %p125
      %p127 = scmp.ne.s32.totalorder %s115, %s116
      %p128 = scmp.eq.s32.totalorder %s33, 1
      %p129 = por %p127, %p128
      %p131 = scmp.ne.s32.totalorder %s116, %s130
      %p132 = scmp.eq.s32.totalorder %s33, 0
      %p133 = por %p131, %p132
      %s135 = sadd.s32 %s134, 1
      %p138 = scmp.eq.s32.totalorder %s27, 1
      %p139 = scmp.ne.s32.totalorder %s134, %s136
      %p140 = scmp.eq.s32.totalorder %s27, 0
      %p141 = por %p139, %p140
      %p142 = scmp.ne.s32.totalorder %s134, %s136
      %p143 = scmp.eq.s32.totalorder %s32, 1
      %p144 = por %p142, %p143
      %p145 = scmp.ne.s32.totalorder %s136, %s137
      %p146 = scmp.eq.s32.totalorder %s32, 0
      %p147 = por %p145, %p146
      %p148 = scmp.ne.s32.totalorder %s136, %s137
      %p149 = scmp.eq.s32.totalorder %s33, 1
      %p150 = por %p148, %p149
      %p152 = scmp.ne.s32.totalorder %s137, %s151
      %p153 = scmp.eq.s32.totalorder %s33, 0
      %p154 = por %p152, %p153
      %s156 = sadd.s32 %s155, 1
      %p159 = scmp.eq.s32.totalorder %s27, 1
      %p160 = scmp.ne.s32.totalorder %s155, %s157
      %p161 = scmp.eq.s32.totalorder %s27, 0
      %p162 = por %p160, %p161
      %p163 = scmp.ne.s32.totalorder %s155, %s157
      %p164 = scmp.eq.s32.totalorder %s32, 1
      %p165 = por %p163, %p164
      %p166 = scmp.ne.s32.totalorder %s157, %s158
      %p167 = scmp.eq.s32.totalorder %s32, 0
      %p168 = por %p166, %p167
      %p169 = scmp.ne.s32.totalorder %s157, %s158
      %p170 = scmp.eq.s32.totalorder %s33, 1
      %p171 = por %p169, %p170
      %p173 = scmp.ne.s32.totalorder %s158, %s172
      %p174 = scmp.eq.s32.totalorder %s33, 0
      %p175 = por %p173, %p174
      %s177 = sadd.s32 %s176, 1
      %p180 = scmp.eq.s32.totalorder %s27, 1
      %p181 = scmp.ne.s32.totalorder %s176, %s178
      %p182 = scmp.eq.s32.totalorder %s27, 0
      %p183 = por %p181, %p182
      %p184 = scmp.ne.s32.totalorder %s176, %s178
      %p185 = scmp.eq.s32.totalorder %s32, 1
      %p186 = por %p184, %p185
      %p187 = scmp.ne.s32.totalorder %s178, %s179
      %p188 = scmp.eq.s32.totalorder %s32, 0
      %p189 = por %p187, %p188
      %p190 = scmp.ne.s32.totalorder %s178, %s179
      %p191 = scmp.eq.s32.totalorder %s33, 1
      %p192 = por %p190, %p191
      %p194 = scmp.ne.s32.totalorder %s179, %s193
      %p195 = scmp.eq.s32.totalorder %s33, 0
      %p196 = por %p194, %p195
      %s198 = sadd.s32 %s197, 1
      %p201 = scmp.eq.s32.totalorder %s27, 1
      %p202 = scmp.ne.s32.totalorder %s197, %s199
      %p203 = scmp.eq.s32.totalorder %s27, 0
      %p204 = por %p202, %p203
      %p205 = scmp.ne.s32.totalorder %s197, %s199
      %p206 = scmp.eq.s32.totalorder %s32, 1
      %p207 = por %p205, %p206
      %p208 = scmp.ne.s32.totalorder %s199, %s200
      %p209 = scmp.eq.s32.totalorder %s32, 0
      %p210 = por %p208, %p209
      %p211 = scmp.ne.s32.totalorder %s199, %s200
      %p212 = scmp.eq.s32.totalorder %s33, 1
      %p213 = por %p211, %p212
      %p215 = scmp.ne.s32.totalorder %s200, %s214
      %p216 = scmp.eq.s32.totalorder %s33, 0
      %p217 = por %p215, %p216
      %s219 = sadd.s32 %s218, 1
      %p222 = scmp.eq.s32.totalorder %s27, 1
      %p223 = scmp.ne.s32.totalorder %s218, %s220
      %p224 = scmp.eq.s32.totalorder %s27, 0
      %p225 = por %p223, %p224
      %p226 = scmp.ne.s32.totalorder %s218, %s220
      %p227 = scmp.eq.s32.totalorder %s32, 1
      %p228 = por %p226, %p227
      %p229 = scmp.ne.s32.totalorder %s220, %s221
      %p230 = scmp.eq.s32.totalorder %s32, 0
      %p231 = por %p229, %p230
      %p232 = scmp.ne.s32.totalorder %s220, %s221
      %p233 = scmp.eq.s32.totalorder %s33, 1
      %p234 = por %p232, %p233
      %p236 = scmp.ne.s32.totalorder %s221, %s235
      %p237 = scmp.eq.s32.totalorder %s33, 0
      %p238 = por %p236, %p237
      %s240 = sadd.s32 %s239, 1
      %p243 = scmp.eq.s32.totalorder %s27, 1
      %p244 = scmp.ne.s32.totalorder %s239, %s241
      %p245 = scmp.eq.s32.totalorder %s27, 0
      %p246 = por %p244, %p245
      %p247 = scmp.ne.s32.totalorder %s239, %s241
      %p248 = scmp.eq.s32.totalorder %s32, 1
      %p249 = por %p247, %p248
      %p250 = scmp.ne.s32.totalorder %s241, %s242
      %p251 = scmp.eq.s32.totalorder %s32, 0
      %p252 = por %p250, %p251
      %p253 = scmp.ne.s32.totalorder %s241, %s242
      %p254 = scmp.eq.s32.totalorder %s33, 1
      %p255 = por %p253, %p254
      %p257 = scmp.ne.s32.totalorder %s242, %s256
      %p258 = scmp.eq.s32.totalorder %s33, 0
      %p259 = por %p257, %p258
      %s260 = ssub.s32 %s27, %s34
      %p261 = scmp.eq.s32.totalorder %s260, 0
      %s263 = sadd.s32 %s262, 1
      %s264 = scalar_select %p261, %s262, %s263
      %p267 = pneg %p261
      %p268 = scmp.eq.s32.totalorder %s27, 1
      %p269 = por %p267, %p268
      %p270 = scmp.ne.s32.totalorder %s262, %s265
      %p271 = scmp.eq.s32.totalorder %s27, 0
      %p272 = por %p270, %p271
      %p273 = scmp.ne.s32.totalorder %s262, %s265
      %p274 = scmp.eq.s32.totalorder %s32, 1
      %p275 = por %p273, %p274
      %p276 = scmp.ne.s32.totalorder %s265, %s266
      %p277 = scmp.eq.s32.totalorder %s32, 0
      %p278 = por %p276, %p277
      %p279 = scmp.ne.s32.totalorder %s265, %s266
      %p280 = scmp.eq.s32.totalorder %s33, 1
      %p281 = por %p279, %p280
      %p283 = scmp.ne.s32.totalorder %s266, %s282
      %p284 = scmp.eq.s32.totalorder %s33, 0
      %p285 = por %p283, %p284
      %p286 = scmp.le.s32.totalorder 1, %s27
      %p287 = scmp.lt.s32.totalorder %s27, 3
      %p288 = pnand %p286, %p287
      %p289 = pneg %p288
      // Predicated region
      $region9: #{tpu_custom_call.1} parent=5 // pred_check
        _
      $region10: #{tpu_custom_call.1} parent=5 // pred_check_branch
        %291 = sbr.rel (%p288) target = $region12
      $region11: #{tpu_custom_call.1} parent=5 // pred_region
        %s292 = ssub.s32 %s27, 1
        // Predicated region
        $region13: #{tpu_custom_call.1} parent=11 // pred_check
          %p293 = pneg %p126
        $region14: #{tpu_custom_call.1} parent=11 // pred_check_branch
          %295 = sbr.rel (%p293) target = $region16
        $region15: #{tpu_custom_call.1} parent=11 // pred_region
          %s297 = ssub.s32 256, 256
          %298 = vsyncadd [#allocation9], %s297
          %s299 = sshll.u32 [#allocation8], 4
          %s300 = int_to_ptr.vmem [resolvable:$true] %s299
          %305 = dma.hbm_to_vmem [thread:$0]  %s3, 256, %s300, [#allocation9], 64, 64, 4
        $region16: #{tpu_custom_call.1} parent=11 // pred_fallthru
          _
        // Predicated region
        $region17: #{tpu_custom_call.1} parent=11 // pred_check
          %p306 = pneg %p147
        $region18: #{tpu_custom_call.1} parent=11 // pred_check_branch
          %308 = sbr.rel (%p306) target = $region20
        $region19: #{tpu_custom_call.1} parent=11 // pred_region
          _
        $region20: #{tpu_custom_call.1} parent=11 // pred_fallthru
          _
        // Predicated region
        $region21: #{tpu_custom_call.1} parent=11 // pred_check
          %p309 = pneg %p168
        $region22: #{tpu_custom_call.1} parent=11 // pred_check_branch
          %311 = sbr.rel (%p309) target = $region24
        $region23: #{tpu_custom_call.1} parent=11 // pred_region
          %s313 = ssub.s32 256, 256
          %314 = vsyncadd [#allocation9], %s313
          %s315 = sshll.u32 [#allocation10], 4
          %s316 = int_to_ptr.vmem [resolvable:$true] %s315
          %321 = dma.hbm_to_vmem [thread:$0]  %s5, 256, %s316, [#allocation9], 64, 64, 4
        $region24: #{tpu_custom_call.1} parent=11 // pred_fallthru
          _
        // Predicated region
        $region25: #{tpu_custom_call.1} parent=11 // pred_check
          %p322 = pneg %p189
        $region26: #{tpu_custom_call.1} parent=11 // pred_check_branch
          %324 = sbr.rel (%p322) target = $region28
        $region27: #{tpu_custom_call.1} parent=11 // pred_region
          %s326 = ssub.s32 256, 256
          %327 = vsyncadd [#allocation12], %s326
          %s328 = sshll.u32 [#allocation11], 4
          %s329 = int_to_ptr.vmem [resolvable:$true] %s328
          %334 = dma.hbm_to_vmem [thread:$0]  %s6, 256, %s329, [#allocation12], 64, 64, 4
        $region28: #{tpu_custom_call.1} parent=11 // pred_fallthru
          _
        // Predicated region
        $region29: #{tpu_custom_call.1} parent=11 // pred_check
          %p335 = pneg %p210
        $region30: #{tpu_custom_call.1} parent=11 // pred_check_branch
          %337 = sbr.rel (%p335) target = $region32
        $region31: #{tpu_custom_call.1} parent=11 // pred_region
          _
        $region32: #{tpu_custom_call.1} parent=11 // pred_fallthru
          _
        // Predicated region
        $region33: #{tpu_custom_call.1} parent=11 // pred_check
          %p338 = pneg %p231
        $region34: #{tpu_custom_call.1} parent=11 // pred_check_branch
          %340 = sbr.rel (%p338) target = $region36
        $region35: #{tpu_custom_call.1} parent=11 // pred_region
          %s342 = ssub.s32 256, 256
          %343 = vsyncadd [#allocation12], %s342
          %s344 = sshll.u32 [#allocation13], 4
          %s345 = int_to_ptr.vmem [resolvable:$true] %s344
          %350 = dma.hbm_to_vmem [thread:$0]  %s8, 256, %s345, [#allocation12], 64, 64, 4
        $region36: #{tpu_custom_call.1} parent=11 // pred_fallthru
          _
        // Predicated region
        $region37: #{tpu_custom_call.1} parent=11 // pred_check
          %p351 = pneg %p252
        $region38: #{tpu_custom_call.1} parent=11 // pred_check_branch
          %353 = sbr.rel (%p351) target = $region40
        $region39: #{tpu_custom_call.1} parent=11 // pred_region
          _
        $region40: #{tpu_custom_call.1} parent=11 // pred_fallthru
          _
      $region12: #{tpu_custom_call.1} parent=5 // pred_fallthru
        _
      %p354 = scmp.lt.s32.totalorder %s27, 2
      // Predicated region
      $region41: #{tpu_custom_call.1} parent=5 // pred_check
        %p355 = pneg %p354
      $region42: #{tpu_custom_call.1} parent=5 // pred_check_branch
        %357 = sbr.rel (%p355) target = $region44
      $region43: #{tpu_custom_call.1} parent=5 // pred_region
        // Predicated region
        $region45: #{tpu_custom_call.1} parent=43 // pred_check
          %p358 = pneg %p47
        $region46: #{tpu_custom_call.1} parent=43 // pred_check_branch
          %360 = sbr.rel (%p358) target = $region48
        $region47: #{tpu_custom_call.1} parent=43 // pred_region
          %s361 = sand.u32 %s37, 1
          %s362 = scalar_lea.sflag [#allocation3], %s361
          %s363 = sand.u32 %s37, 1
          %s364 = smul.addr %s363, 4
          %s365 = scalar_lea.vmem [#allocation2], %s364
          %s367 = ssub.s32 64, 64
          %368 = vsyncadd %s362, %s367
          %s369 = smul.addr %s27, 64
          %s370 = scalar_lea.hbm %s0, %s369
          %s372 = sshll.u32 %s365, 4
          %s373 = int_to_ptr.vmem [resolvable:$true] %s372
          %375 = dma.hbm_to_vmem [thread:$0]  %s370, 64, %s373, %s362
        $region48: #{tpu_custom_call.1} parent=43 // pred_fallthru
          _
        // Predicated region
        $region49: #{tpu_custom_call.1} parent=43 // pred_check
          %p376 = pneg %p73
        $region50: #{tpu_custom_call.1} parent=43 // pred_check_branch
          %378 = sbr.rel (%p376) target = $region52
        $region51: #{tpu_custom_call.1} parent=43 // pred_region
          %s379 = sand.u32 %s27, 1
          %s380 = scalar_lea.sflag [#allocation6], %s379
          %s381 = sand.u32 %s63, 1
          %s382 = smul.addr %s381, 4
          %s383 = scalar_lea.vmem [#allocation5], %s382
          %s385 = ssub.s32 64, 64
          %386 = vsyncadd %s380, %s385
          %s387 = smul.addr %s27, 64
          %s388 = scalar_lea.hbm %s1, %s387
          %s390 = sshll.u32 %s383, 4
          %s391 = int_to_ptr.vmem [resolvable:$true] %s390
          %393 = dma.hbm_to_vmem [thread:$0]  %s388, 64, %s391, %s380
        $region52: #{tpu_custom_call.1} parent=43 // pred_fallthru
          _
        // Predicated region
        $region53: #{tpu_custom_call.1} parent=43 // pred_check
          %p394 = pneg %p99
        $region54: #{tpu_custom_call.1} parent=43 // pred_check_branch
          %396 = sbr.rel (%p394) target = $region56
        $region55: #{tpu_custom_call.1} parent=43 // pred_region
          %s397 = sand.u32 %s27, 1
          %s398 = scalar_lea.sflag [#allocation6], %s397
          %s399 = sand.u32 %s89, 1
          %s400 = smul.addr %s399, 4
          %s401 = scalar_lea.vmem [#allocation7], %s400
          %s403 = ssub.s32 64, 64
          %404 = vsyncadd %s398, %s403
          %s405 = smul.addr %s27, 64
          %s406 = scalar_lea.hbm %s2, %s405
          %s408 = sshll.u32 %s401, 4
          %s409 = int_to_ptr.vmem [resolvable:$true] %s408
          %411 = dma.hbm_to_vmem [thread:$0]  %s406, 64, %s409, %s398
        $region56: #{tpu_custom_call.1} parent=43 // pred_fallthru
          _
      $region44: #{tpu_custom_call.1} parent=5 // pred_fallthru
        _
      %p412 = scmp.le.s32.totalorder 1, %s27
      %p413 = scmp.lt.s32.totalorder %s27, 3
      %p414 = pnand %p412, %p413
      %p415 = pneg %p414
      // Predicated region
      $region57: #{tpu_custom_call.1} parent=5 // pred_check
        _
      $region58: #{tpu_custom_call.1} parent=5 // pred_check_branch
        %417 = sbr.rel (%p414) target = $region60
      $region59: #{tpu_custom_call.1} parent=5 // pred_region
        %s418 = ssub.s32 %s27, 1
        %s419 = sand.u32 %s40, 1
        %s420 = scalar_lea.sflag [#allocation3], %s419
        %s421 = sand.u32 %s40, 1
        %s422 = smul.addr %s421, 4
        %s423 = scalar_lea.vmem [#allocation2], %s422
        // Predicated region
        $region61: #{tpu_custom_call.1} parent=59 // pred_check
          %p424 = pneg %p53
        $region62: #{tpu_custom_call.1} parent=59 // pred_check_branch
          %426 = sbr.rel (%p424) target = $region64
        $region63: #{tpu_custom_call.1} parent=59 // pred_region
          %427 = dma.done %s420, 64
        $region64: #{tpu_custom_call.1} parent=59 // pred_fallthru
          _
        %s428 = sand.u32 %s32, 1
        %s429 = scalar_lea.sflag [#allocation6], %s428
        %s430 = sand.u32 %s66, 1
        %s431 = smul.addr %s430, 4
        %s432 = scalar_lea.vmem [#allocation5], %s431
        // Predicated region
        $region65: #{tpu_custom_call.1} parent=59 // pred_check
          %p433 = pneg %p79
        $region66: #{tpu_custom_call.1} parent=59 // pred_check_branch
          %435 = sbr.rel (%p433) target = $region68
        $region67: #{tpu_custom_call.1} parent=59 // pred_region
          %436 = dma.done %s429, 64
        $region68: #{tpu_custom_call.1} parent=59 // pred_fallthru
          _
        %s437 = sand.u32 %s32, 1
        %s438 = scalar_lea.sflag [#allocation6], %s437
        %s439 = sand.u32 %s92, 1
        %s440 = smul.addr %s439, 4
        %s441 = scalar_lea.vmem [#allocation7], %s440
        // Predicated region
        $region69: #{tpu_custom_call.1} parent=59 // pred_check
          %p442 = pneg %p105
        $region70: #{tpu_custom_call.1} parent=59 // pred_check_branch
          %444 = sbr.rel (%p442) target = $region72
        $region71: #{tpu_custom_call.1} parent=59 // pred_region
          %445 = dma.done %s438, 64
        $region72: #{tpu_custom_call.1} parent=59 // pred_fallthru
          _
        // Predicated region
        $region73: #{tpu_custom_call.1} parent=59 // pred_check
          %p446 = pneg %p126
        $region74: #{tpu_custom_call.1} parent=59 // pred_check_branch
          %448 = sbr.rel (%p446) target = $region76
        $region75: #{tpu_custom_call.1} parent=59 // pred_region
          %449 = dma.done [#allocation9], 256
        $region76: #{tpu_custom_call.1} parent=59 // pred_fallthru
          _
        // Predicated region
        $region77: #{tpu_custom_call.1} parent=59 // pred_check
          %p450 = pneg %p168
        $region78: #{tpu_custom_call.1} parent=59 // pred_check_branch
          %452 = sbr.rel (%p450) target = $region80
        $region79: #{tpu_custom_call.1} parent=59 // pred_region
          %453 = dma.done [#allocation9], 256
        $region80: #{tpu_custom_call.1} parent=59 // pred_fallthru
          _
        // Predicated region
        $region81: #{tpu_custom_call.1} parent=59 // pred_check
          %p454 = pneg %p189
        $region82: #{tpu_custom_call.1} parent=59 // pred_check_branch
          %456 = sbr.rel (%p454) target = $region84
        $region83: #{tpu_custom_call.1} parent=59 // pred_region
          %457 = dma.done [#allocation12], 256
        $region84: #{tpu_custom_call.1} parent=59 // pred_fallthru
          _
        // Predicated region
        $region85: #{tpu_custom_call.1} parent=59 // pred_check
          %p458 = pneg %p231
        $region86: #{tpu_custom_call.1} parent=59 // pred_check_branch
          %460 = sbr.rel (%p458) target = $region88
        $region87: #{tpu_custom_call.1} parent=59 // pred_region
          %461 = dma.done [#allocation12], 256
        $region88: #{tpu_custom_call.1} parent=59 // pred_fallthru
          _
        %s462 = sand.u32 %s40, 1
        %s463 = scalar_lea.sflag [#allocation3], %s462
        %s464 = sand.u32 %s40, 1
        %s465 = smul.addr %s464, 4
        %s466 = scalar_lea.vmem [#allocation2], %s465
        %p467 = pneg %p53
        %p468 = pneg %p50
        %s469 = sand.u32 %s32, 1
        %s470 = scalar_lea.sflag [#allocation6], %s469
        %s471 = sand.u32 %s66, 1
        %s472 = smul.addr %s471, 4
        %s473 = scalar_lea.vmem [#allocation5], %s472
        %p474 = pneg %p79
        %p475 = pneg %p76
        %s476 = sand.u32 %s32, 1
        %s477 = scalar_lea.sflag [#allocation6], %s476
        %s478 = sand.u32 %s92, 1
        %s479 = smul.addr %s478, 4
        %s480 = scalar_lea.vmem [#allocation7], %s479
        %p481 = pneg %p105
        %p482 = pneg %p102
        %p483 = pneg %p126
        %p484 = pneg %p123
        %p485 = pneg %p147
        %p486 = pneg %p144
        %p487 = pneg %p168
        %p488 = pneg %p165
        %p489 = pneg %p189
        %p490 = pneg %p186
        %p491 = pneg %p210
        %p492 = pneg %p207
        %p493 = pneg %p231
        %p494 = pneg %p228
        %p495 = pneg %p252
        %p496 = pneg %p249
        %p497 = pneg %p278
        %p498 = pneg %p275
        %s499 = sand.u32 %s265, 1
        %s500 = scalar_lea.sflag [#allocation4], %s499
        %s501 = sand.u32 %s265, 1
        %s502 = smul.addr %s501, 4
        %s503 = scalar_lea.vmem [#allocation14], %s502
        %v505 = vld [vmem:[%s423] sm:$0xf]
        %v506 = vld [vmem:[%s432] sm:$0xf]
        %v507 = vld [vmem:[%s441] sm:$0xf]
        %v508 = vld [vmem:[#allocation8] sm:$0xf]
        %v509 = vld [vmem:[#allocation8 + $0x4] sm:$0xf]
        %v510 = vld [vmem:[#allocation8 + $0x8] sm:$0xf]
        %v511 = vld [vmem:[#allocation8 + $0xc] sm:$0xf]
        %v512 = vld [vmem:[%s4] sm:$0x1]
        %v513 = vunpack.c.l.bf16 %v512
        %v514 = vlaneseq
        %v515 = vshrl.u32 %v514, 7
        %v516 = vsub.s32 0, %v515
        %v517 = vrot.slane %v513, %v516
        %v522 = vunpack.c.l.b16 %v508
        %v523 = vunpack.c.l.b16 %v509
        %v524 = vunpack.c.l.b16 %v510
        %v525 = vunpack.c.l.b16 %v511
        %v526 = vpack.c.b16 %v523, %v522
        %v527 = vpack.c.b16 %v525, %v524
        %vm530 = vcmask 261120
        %v532 = vsel %vm530, %v505, 0
        %534 = vmatprep.subr.bf16.mxu0 0
        %535 = vmatpush1.bf16.msra.mxu0 0
        %536 = vmatprep.subr.bf16.mxu0 0
        %537 = vmatpush1.bf16.msra.mxu0 0
        %538 = vmatprep.subr.bf16.mxu0 0
        %539 = vmatpush1.bf16.msra.mxu0 0
        %540 = vmatprep.subr.bf16.mxu0 0
        %541 = vmatpush1.bf16.msra.mxu0 0
        %542 = vmatprep.subr.bf16.mxu0 0
        %543 = vmatpush1.bf16.msra.mxu0 0
        %544 = vmatprep.subr.bf16.mxu0 0
        %545 = vmatpush1.bf16.msra.mxu0 0
        %546 = vmatprep.subr.bf16.mxu0 0
        %547 = vmatpush1.bf16.msra.mxu0 %v527
        %548 = vmatprep.subr.bf16.mxu0 0
        %549 = vmatpush1.bf16.msra.mxu0 %v526
        %550 = vmatprep.subr.bf16.mxu0 0
        %551 = vmatpush2.bf16.msra.mxu0 0
        %552 = vmatprep.subr.bf16.mxu0 0
        %553 = vmatpush2.bf16.msra.mxu0 0
        %554 = vmatprep.subr.bf16.mxu0 0
        %555 = vmatpush2.bf16.msra.mxu0 0
        %556 = vmatprep.subr.bf16.mxu0 0
        %557 = vmatpush2.bf16.msra.mxu0 0
        %558 = vmatprep.subr.bf16.mxu0 0
        %559 = vmatpush2.bf16.msra.mxu0 0
        %560 = vmatprep.subr.bf16.mxu0 0
        %561 = vmatpush2.bf16.msra.mxu0 0
        %562 = vmatprep.subr.bf16.mxu0 0
        %563 = vmatpush2.bf16.msra.mxu0 0
        %564 = vmatprep.subr.bf16.mxu0 0
        %565 = vmatpush2.bf16.msra.mxu0 0
        %566 = vmatprep.mubr.bf16.mxu0 0
        %567 = vmatmul.mubr.bf16.gmra.mxu0 %v532
        %v568 = vpop.f32.mrf.mxu0
        %v569 = vadd.f32 %v517, %v568
        %v570 = vpop.f32.mrf.mxu0
        %v571 = vpop.f32.mrf.mxu0
        %v572 = vpop.f32.mrf.mxu0
        %573 = vdwg.mxu0
        %v574 = vmul.f32 %v569, 0.35355338
        %v575 = vpack.c.bf16 %v574, %v574
        %v576 = vld [vmem:[#allocation10] sm:$0xf]
        %v577 = vld [vmem:[#allocation10 + $0x4] sm:$0xf]
        %v578 = vld [vmem:[#allocation10 + $0x8] sm:$0xf]
        %v579 = vld [vmem:[#allocation10 + $0xc] sm:$0xf]
        %v584 = vunpack.c.l.b16 %v576
        %v585 = vunpack.c.l.b16 %v577
        %v586 = vunpack.c.l.b16 %v578
        %v587 = vunpack.c.l.b16 %v579
        %v588 = vpack.c.b16 %v585, %v584
        %v589 = vpack.c.b16 %v587, %v586
        %v593 = vsel %vm530, %v506, 0
        %595 = vmatprep.subr.bf16.mxu0 0
        %596 = vmatpush1.bf16.msra.mxu0 0
        %597 = vmatprep.subr.bf16.mxu0 0
        %598 = vmatpush1.bf16.msra.mxu0 0
        %599 = vmatprep.subr.bf16.mxu0 0
        %600 = vmatpush1.bf16.msra.mxu0 0
        %601 = vmatprep.subr.bf16.mxu0 0
        %602 = vmatpush1.bf16.msra.mxu0 0
        %603 = vmatprep.subr.bf16.mxu0 0
        %604 = vmatpush1.bf16.msra.mxu0 0
        %605 = vmatprep.subr.bf16.mxu0 0
        %606 = vmatpush1.bf16.msra.mxu0 0
        %607 = vmatprep.subr.bf16.mxu0 0
        %608 = vmatpush1.bf16.msra.mxu0 %v589
        %609 = vmatprep.subr.bf16.mxu0 0
        %610 = vmatpush1.bf16.msra.mxu0 %v588
        %611 = vmatprep.subr.bf16.mxu0 0
        %612 = vmatpush2.bf16.msra.mxu0 0
        %613 = vmatprep.subr.bf16.mxu0 0
        %614 = vmatpush2.bf16.msra.mxu0 0
        %615 = vmatprep.subr.bf16.mxu0 0
        %616 = vmatpush2.bf16.msra.mxu0 0
        %617 = vmatprep.subr.bf16.mxu0 0
        %618 = vmatpush2.bf16.msra.mxu0 0
        %619 = vmatprep.subr.bf16.mxu0 0
        %620 = vmatpush2.bf16.msra.mxu0 0
        %621 = vmatprep.subr.bf16.mxu0 0
        %622 = vmatpush2.bf16.msra.mxu0 0
        %623 = vmatprep.subr.bf16.mxu0 0
        %624 = vmatpush2.bf16.msra.mxu0 0
        %625 = vmatprep.subr.bf16.mxu0 0
        %626 = vmatpush2.bf16.msra.mxu0 0
        %627 = vmatprep.mubr.bf16.mxu0 0
        %628 = vmatmul.mubr.bf16.gmra.mxu0 %v593
        %v629 = vpop.f32.mrf.mxu0
        %v630 = vadd.f32 0.0, %v629
        %v631 = vpop.f32.mrf.mxu0
        %v632 = vpop.f32.mrf.mxu0
        %v633 = vpop.f32.mrf.mxu0
        %634 = vdwg.mxu0
        %v635 = vpack.c.bf16 %v630, %v630
        %v636 = vld [vmem:[#allocation11] sm:$0xf]
        %v637 = vld [vmem:[#allocation11 + $0x4] sm:$0xf]
        %v638 = vld [vmem:[#allocation11 + $0x8] sm:$0xf]
        %v639 = vld [vmem:[#allocation11 + $0xc] sm:$0xf]
        %v640 = vld [vmem:[%s7] sm:$0x1]
        %v641 = vunpack.c.l.bf16 %v640
        %v642 = vlaneseq
        %v643 = vshrl.u32 %v642, 7
        %v644 = vsub.s32 0, %v643
        %v645 = vrot.slane %v641, %v644
        %v650 = vunpack.c.l.b16 %v636
        %v651 = vunpack.c.l.b16 %v637
        %v652 = vunpack.c.l.b16 %v638
        %v653 = vunpack.c.l.b16 %v639
        %v654 = vpack.c.b16 %v651, %v650
        %v655 = vpack.c.b16 %v653, %v652
        %v659 = vsel %vm530, %v507, 0
        %661 = vmatprep.subr.bf16.mxu0 0
        %662 = vmatpush1.bf16.msra.mxu0 0
        %663 = vmatprep.subr.bf16.mxu0 0
        %664 = vmatpush1.bf16.msra.mxu0 0
        %665 = vmatprep.subr.bf16.mxu0 0
        %666 = vmatpush1.bf16.msra.mxu0 0
        %667 = vmatprep.subr.bf16.mxu0 0
        %668 = vmatpush1.bf16.msra.mxu0 0
        %669 = vmatprep.subr.bf16.mxu0 0
        %670 = vmatpush1.bf16.msra.mxu0 0
        %671 = vmatprep.subr.bf16.mxu0 0
        %672 = vmatpush1.bf16.msra.mxu0 0
        %673 = vmatprep.subr.bf16.mxu0 0
        %674 = vmatpush1.bf16.msra.mxu0 %v655
        %675 = vmatprep.subr.bf16.mxu0 0
        %676 = vmatpush1.bf16.msra.mxu0 %v654
        %677 = vmatprep.subr.bf16.mxu0 0
        %678 = vmatpush2.bf16.msra.mxu0 0
        %679 = vmatprep.subr.bf16.mxu0 0
        %680 = vmatpush2.bf16.msra.mxu0 0
        %681 = vmatprep.subr.bf16.mxu0 0
        %682 = vmatpush2.bf16.msra.mxu0 0
        %683 = vmatprep.subr.bf16.mxu0 0
        %684 = vmatpush2.bf16.msra.mxu0 0
        %685 = vmatprep.subr.bf16.mxu0 0
        %686 = vmatpush2.bf16.msra.mxu0 0
        %687 = vmatprep.subr.bf16.mxu0 0
        %688 = vmatpush2.bf16.msra.mxu0 0
        %689 = vmatprep.subr.bf16.mxu0 0
        %690 = vmatpush2.bf16.msra.mxu0 0
        %691 = vmatprep.subr.bf16.mxu0 0
        %692 = vmatpush2.bf16.msra.mxu0 0
        %693 = vmatprep.mubr.bf16.mxu0 0
        %694 = vmatmul.mubr.bf16.gmra.mxu0 %v659
        %v695 = vpop.f32.mrf.mxu0
        %v696 = vadd.f32 %v645, %v695
        %v697 = vpop.f32.mrf.mxu0
        %v698 = vpop.f32.mrf.mxu0
        %v699 = vpop.f32.mrf.mxu0
        %700 = vdwg.mxu0
        %v701 = vpack.c.bf16 %v696, %v696
        %vm702 = vcmask 64512
        %v704 = vsel %vm702, %v575, 0
        %v707 = vsel %vm702, %v635, 0
        %709 = vmatprep.subr.bf16.mxu0 0
        %710 = vmatpush1.bf16.xpose.msra.mxu0 0
        %711 = vmatprep.subr.bf16.mxu0 0
        %712 = vmatpush1.bf16.xpose.msra.mxu0 0
        %713 = vmatprep.subr.bf16.mxu0 0
        %714 = vmatpush1.bf16.xpose.msra.mxu0 0
        %715 = vmatprep.subr.bf16.mxu0 0
        %716 = vmatpush1.bf16.xpose.msra.mxu0 0
        %717 = vmatprep.subr.bf16.mxu0 0
        %718 = vmatpush1.bf16.xpose.msra.mxu0 0
        %719 = vmatprep.subr.bf16.mxu0 0
        %720 = vmatpush1.bf16.xpose.msra.mxu0 0
        %721 = vmatprep.subr.bf16.mxu0 0
        %722 = vmatpush1.bf16.xpose.msra.mxu0 0
        %723 = vmatprep.subr.bf16.mxu0 0
        %724 = vmatpush1.bf16.xpose.msra.mxu0 %v707
        %725 = vmatprep.subr.bf16.mxu0 0
        %726 = vmatpush2.bf16.xpose.msra.mxu0 0
        %727 = vmatprep.subr.bf16.mxu0 0
        %728 = vmatpush2.bf16.xpose.msra.mxu0 0
        %729 = vmatprep.subr.bf16.mxu0 0
        %730 = vmatpush2.bf16.xpose.msra.mxu0 0
        %731 = vmatprep.subr.bf16.mxu0 0
        %732 = vmatpush2.bf16.xpose.msra.mxu0 0
        %733 = vmatprep.subr.bf16.mxu0 0
        %734 = vmatpush2.bf16.xpose.msra.mxu0 0
        %735 = vmatprep.subr.bf16.mxu0 0
        %736 = vmatpush2.bf16.xpose.msra.mxu0 0
        %737 = vmatprep.subr.bf16.mxu0 0
        %738 = vmatpush2.bf16.xpose.msra.mxu0 0
        %739 = vmatprep.subr.bf16.mxu0 0
        %740 = vmatpush2.bf16.xpose.msra.mxu0 0
        %741 = vmatprep.mubr.bf16.mxu0 0
        %742 = vmatmul.mubr.bf16.gmra.mxu0 %v704
        %v743 = vpop.f32.mrf.mxu0
        %v744 = vadd.f32 0.0, %v743
        %v745 = vpop.f32.mrf.mxu0
        %v746 = vpop.f32.mrf.mxu0
        %v747 = vpop.f32.mrf.mxu0
        %748 = vdwg.mxu0
        %v749 = vsel %vm702, %v744, -inf
        %750 = vmax.xlane.f32.xlu0 %v749
        %v751 = vpop.xlane.xlu0 %750
        %v752 = vsub.f32 %v744, %v751
        %v753 = vmul.f32 %v752, 1.442695
        %v754 = vpow.pop %v753
        %v755 = vsel %vm702, %v754, 0.0
        %756 = vadd.xlane.f32.xlu0 %v755
        %v757 = vpop.xlane.xlu0 %756
        %v758 = vrcp.pop %v757
        %v759 = vmul.f32 %v754, %v758
        %v760 = vpack.c.bf16 %v759, %v759
        %v762 = vsel %vm702, %v760, 0
        %vm764 = vcmask 1043456
        %v766 = vsel %vm764, %v701, 0
        %768 = vmatprep.subr.bf16.mxu0 0
        %769 = vmatpush1.bf16.msra.mxu0 0
        %770 = vmatprep.subr.bf16.mxu0 0
        %771 = vmatpush1.bf16.msra.mxu0 0
        %772 = vmatprep.subr.bf16.mxu0 0
        %773 = vmatpush1.bf16.msra.mxu0 0
        %774 = vmatprep.subr.bf16.mxu0 0
        %775 = vmatpush1.bf16.msra.mxu0 0
        %776 = vmatprep.subr.bf16.mxu0 0
        %777 = vmatpush1.bf16.msra.mxu0 0
        %778 = vmatprep.subr.bf16.mxu0 0
        %779 = vmatpush1.bf16.msra.mxu0 0
        %780 = vmatprep.subr.bf16.mxu0 0
        %781 = vmatpush1.bf16.msra.mxu0 0
        %782 = vmatprep.subr.bf16.mxu0 0
        %783 = vmatpush1.bf16.msra.mxu0 %v766
        %784 = vmatprep.subr.bf16.mxu0 0
        %785 = vmatpush2.bf16.msra.mxu0 0
        %786 = vmatprep.subr.bf16.mxu0 0
        %787 = vmatpush2.bf16.msra.mxu0 0
        %788 = vmatprep.subr.bf16.mxu0 0
        %789 = vmatpush2.bf16.msra.mxu0 0
        %790 = vmatprep.subr.bf16.mxu0 0
        %791 = vmatpush2.bf16.msra.mxu0 0
        %792 = vmatprep.subr.bf16.mxu0 0
        %793 = vmatpush2.bf16.msra.mxu0 0
        %794 = vmatprep.subr.bf16.mxu0 0
        %795 = vmatpush2.bf16.msra.mxu0 0
        %796 = vmatprep.subr.bf16.mxu0 0
        %797 = vmatpush2.bf16.msra.mxu0 0
        %798 = vmatprep.subr.bf16.mxu0 0
        %799 = vmatpush2.bf16.msra.mxu0 0
        %800 = vmatprep.mubr.bf16.mxu0 0
        %801 = vmatmul.mubr.bf16.gmra.mxu0 %v762
        %v802 = vpop.f32.mrf.mxu0
        %v803 = vadd.f32 0.0, %v802
        %v804 = vpop.f32.mrf.mxu0
        %v805 = vpop.f32.mrf.mxu0
        %v806 = vpop.f32.mrf.mxu0
        %807 = vdwg.mxu0
        %809 = vrot.lane.b32.xlu0 %v575, 120
        %v810 = vpop.permute.xlu0 %809
        %812 = vrot.lane.b32.xlu0 %v635, 120
        %v813 = vpop.permute.xlu0 %812
        %v815 = vsel %vm702, %v810, 0
        %v818 = vsel %vm702, %v813, 0
        %820 = vmatprep.subr.bf16.mxu0 0
        %821 = vmatpush1.bf16.xpose.msra.mxu0 0
        %822 = vmatprep.subr.bf16.mxu0 0
        %823 = vmatpush1.bf16.xpose.msra.mxu0 0
        %824 = vmatprep.subr.bf16.mxu0 0
        %825 = vmatpush1.bf16.xpose.msra.mxu0 0
        %826 = vmatprep.subr.bf16.mxu0 0
        %827 = vmatpush1.bf16.xpose.msra.mxu0 0
        %828 = vmatprep.subr.bf16.mxu0 0
        %829 = vmatpush1.bf16.xpose.msra.mxu0 0
        %830 = vmatprep.subr.bf16.mxu0 0
        %831 = vmatpush1.bf16.xpose.msra.mxu0 0
        %832 = vmatprep.subr.bf16.mxu0 0
        %833 = vmatpush1.bf16.xpose.msra.mxu0 0
        %834 = vmatprep.subr.bf16.mxu0 0
        %835 = vmatpush1.bf16.xpose.msra.mxu0 %v818
        %836 = vmatprep.subr.bf16.mxu0 0
        %837 = vmatpush2.bf16.xpose.msra.mxu0 0
        %838 = vmatprep.subr.bf16.mxu0 0
        %839 = vmatpush2.bf16.xpose.msra.mxu0 0
        %840 = vmatprep.subr.bf16.mxu0 0
        %841 = vmatpush2.bf16.xpose.msra.mxu0 0
        %842 = vmatprep.subr.bf16.mxu0 0
        %843 = vmatpush2.bf16.xpose.msra.mxu0 0
        %844 = vmatprep.subr.bf16.mxu0 0
        %845 = vmatpush2.bf16.xpose.msra.mxu0 0
        %846 = vmatprep.subr.bf16.mxu0 0
        %847 = vmatpush2.bf16.xpose.msra.mxu0 0
        %848 = vmatprep.subr.bf16.mxu0 0
        %849 = vmatpush2.bf16.xpose.msra.mxu0 0
        %850 = vmatprep.subr.bf16.mxu0 0
        %851 = vmatpush2.bf16.xpose.msra.mxu0 0
        %852 = vmatprep.mubr.bf16.mxu0 0
        %853 = vmatmul.mubr.bf16.gmra.mxu0 %v815
        %v854 = vpop.f32.mrf.mxu0
        %v855 = vadd.f32 0.0, %v854
        %v856 = vpop.f32.mrf.mxu0
        %v857 = vpop.f32.mrf.mxu0
        %v858 = vpop.f32.mrf.mxu0
        %859 = vdwg.mxu0
        %v860 = vsel %vm702, %v855, -inf
        %861 = vmax.xlane.f32.xlu0 %v860
        %v862 = vpop.xlane.xlu0 %861
        %v863 = vsub.f32 %v855, %v862
        %v864 = vmul.f32 %v863, 1.442695
        %v865 = vpow.pop %v864
        %v866 = vsel %vm702, %v865, 0.0
        %867 = vadd.xlane.f32.xlu0 %v866
        %v868 = vpop.xlane.xlu0 %867
        %v869 = vrcp.pop %v868
        %v870 = vmul.f32 %v865, %v869
        %v871 = vpack.c.bf16 %v870, %v870
        %873 = vrot.lane.b32.xlu0 %v701, 120
        %v874 = vpop.permute.xlu0 %873
        %v876 = vsel %vm702, %v871, 0
        %v879 = vsel %vm764, %v874, 0
        %881 = vmatprep.subr.bf16.mxu0 0
        %882 = vmatpush1.bf16.msra.mxu0 0
        %883 = vmatprep.subr.bf16.mxu0 0
        %884 = vmatpush1.bf16.msra.mxu0 0
        %885 = vmatprep.subr.bf16.mxu0 0
        %886 = vmatpush1.bf16.msra.mxu0 0
        %887 = vmatprep.subr.bf16.mxu0 0
        %888 = vmatpush1.bf16.msra.mxu0 0
        %889 = vmatprep.subr.bf16.mxu0 0
        %890 = vmatpush1.bf16.msra.mxu0 0
        %891 = vmatprep.subr.bf16.mxu0 0
        %892 = vmatpush1.bf16.msra.mxu0 0
        %893 = vmatprep.subr.bf16.mxu0 0
        %894 = vmatpush1.bf16.msra.mxu0 0
        %895 = vmatprep.subr.bf16.mxu0 0
        %896 = vmatpush1.bf16.msra.mxu0 %v879
        %897 = vmatprep.subr.bf16.mxu0 0
        %898 = vmatpush2.bf16.msra.mxu0 0
        %899 = vmatprep.subr.bf16.mxu0 0
        %900 = vmatpush2.bf16.msra.mxu0 0
        %901 = vmatprep.subr.bf16.mxu0 0
        %902 = vmatpush2.bf16.msra.mxu0 0
        %903 = vmatprep.subr.bf16.mxu0 0
        %904 = vmatpush2.bf16.msra.mxu0 0
        %905 = vmatprep.subr.bf16.mxu0 0
        %906 = vmatpush2.bf16.msra.mxu0 0
        %907 = vmatprep.subr.bf16.mxu0 0
        %908 = vmatpush2.bf16.msra.mxu0 0
        %909 = vmatprep.subr.bf16.mxu0 0
        %910 = vmatpush2.bf16.msra.mxu0 0
        %911 = vmatprep.subr.bf16.mxu0 0
        %912 = vmatpush2.bf16.msra.mxu0 0
        %913 = vmatprep.mubr.bf16.mxu0 0
        %914 = vmatmul.mubr.bf16.gmra.mxu0 %v876
        %v915 = vpop.f32.mrf.mxu0
        %v916 = vadd.f32 0.0, %v915
        %v917 = vpop.f32.mrf.mxu0
        %v918 = vpop.f32.mrf.mxu0
        %v919 = vpop.f32.mrf.mxu0
        %920 = vdwg.mxu0
        %921 = vrot.lane.b32.xlu0 %v575, 112
        %v922 = vpop.permute.xlu0 %921
        %923 = vrot.lane.b32.xlu0 %v635, 112
        %v924 = vpop.permute.xlu0 %923
        %v926 = vsel %vm702, %v922, 0
        %v929 = vsel %vm702, %v924, 0
        %931 = vmatprep.subr.bf16.mxu0 0
        %932 = vmatpush1.bf16.xpose.msra.mxu0 0
        %933 = vmatprep.subr.bf16.mxu0 0
        %934 = vmatpush1.bf16.xpose.msra.mxu0 0
        %935 = vmatprep.subr.bf16.mxu0 0
        %936 = vmatpush1.bf16.xpose.msra.mxu0 0
        %937 = vmatprep.subr.bf16.mxu0 0
        %938 = vmatpush1.bf16.xpose.msra.mxu0 0
        %939 = vmatprep.subr.bf16.mxu0 0
        %940 = vmatpush1.bf16.xpose.msra.mxu0 0
        %941 = vmatprep.subr.bf16.mxu0 0
        %942 = vmatpush1.bf16.xpose.msra.mxu0 0
        %943 = vmatprep.subr.bf16.mxu0 0
        %944 = vmatpush1.bf16.xpose.msra.mxu0 0
        %945 = vmatprep.subr.bf16.mxu0 0
        %946 = vmatpush1.bf16.xpose.msra.mxu0 %v929
        %947 = vmatprep.subr.bf16.mxu0 0
        %948 = vmatpush2.bf16.xpose.msra.mxu0 0
        %949 = vmatprep.subr.bf16.mxu0 0
        %950 = vmatpush2.bf16.xpose.msra.mxu0 0
        %951 = vmatprep.subr.bf16.mxu0 0
        %952 = vmatpush2.bf16.xpose.msra.mxu0 0
        %953 = vmatprep.subr.bf16.mxu0 0
        %954 = vmatpush2.bf16.xpose.msra.mxu0 0
        %955 = vmatprep.subr.bf16.mxu0 0
        %956 = vmatpush2.bf16.xpose.msra.mxu0 0
        %957 = vmatprep.subr.bf16.mxu0 0
        %958 = vmatpush2.bf16.xpose.msra.mxu0 0
        %959 = vmatprep.subr.bf16.mxu0 0
        %960 = vmatpush2.bf16.xpose.msra.mxu0 0
        %961 = vmatprep.subr.bf16.mxu0 0
        %962 = vmatpush2.bf16.xpose.msra.mxu0 0
        %963 = vmatprep.mubr.bf16.mxu0 0
        %964 = vmatmul.mubr.bf16.gmra.mxu0 %v926
        %v965 = vpop.f32.mrf.mxu0
        %v966 = vadd.f32 0.0, %v965
        %v967 = vpop.f32.mrf.mxu0
        %v968 = vpop.f32.mrf.mxu0
        %v969 = vpop.f32.mrf.mxu0
        %970 = vdwg.mxu0
        %v971 = vsel %vm702, %v966, -inf
        %972 = vmax.xlane.f32.xlu0 %v971
        %v973 = vpop.xlane.xlu0 %972
        %v974 = vsub.f32 %v966, %v973
        %v975 = vmul.f32 %v974, 1.442695
        %v976 = vpow.pop %v975
        %v977 = vsel %vm702, %v976, 0.0
        %978 = vadd.xlane.f32.xlu0 %v977
        %v979 = vpop.xlane.xlu0 %978
        %v980 = vrcp.pop %v979
        %v981 = vmul.f32 %v976, %v980
        %v982 = vpack.c.bf16 %v981, %v981
        %983 = vrot.lane.b32.xlu0 %v701, 112
        %v984 = vpop.permute.xlu0 %983
        %v986 = vsel %vm702, %v982, 0
        %v989 = vsel %vm764, %v984, 0
        %991 = vmatprep.subr.bf16.mxu0 0
        %992 = vmatpush1.bf16.msra.mxu0 0
        %993 = vmatprep.subr.bf16.mxu0 0
        %994 = vmatpush1.bf16.msra.mxu0 0
        %995 = vmatprep.subr.bf16.mxu0 0
        %996 = vmatpush1.bf16.msra.mxu0 0
        %997 = vmatprep.subr.bf16.mxu0 0
        %998 = vmatpush1.bf16.msra.mxu0 0
        %999 = vmatprep.subr.bf16.mxu0 0
        %1000 = vmatpush1.bf16.msra.mxu0 0
        %1001 = vmatprep.subr.bf16.mxu0 0
        %1002 = vmatpush1.bf16.msra.mxu0 0
        %1003 = vmatprep.subr.bf16.mxu0 0
        %1004 = vmatpush1.bf16.msra.mxu0 0
        %1005 = vmatprep.subr.bf16.mxu0 0
        %1006 = vmatpush1.bf16.msra.mxu0 %v989
        %1007 = vmatprep.subr.bf16.mxu0 0
        %1008 = vmatpush2.bf16.msra.mxu0 0
        %1009 = vmatprep.subr.bf16.mxu0 0
        %1010 = vmatpush2.bf16.msra.mxu0 0
        %1011 = vmatprep.subr.bf16.mxu0 0
        %1012 = vmatpush2.bf16.msra.mxu0 0
        %1013 = vmatprep.subr.bf16.mxu0 0
        %1014 = vmatpush2.bf16.msra.mxu0 0
        %1015 = vmatprep.subr.bf16.mxu0 0
        %1016 = vmatpush2.bf16.msra.mxu0 0
        %1017 = vmatprep.subr.bf16.mxu0 0
        %1018 = vmatpush2.bf16.msra.mxu0 0
        %1019 = vmatprep.subr.bf16.mxu0 0
        %1020 = vmatpush2.bf16.msra.mxu0 0
        %1021 = vmatprep.subr.bf16.mxu0 0
        %1022 = vmatpush2.bf16.msra.mxu0 0
        %1023 = vmatprep.mubr.bf16.mxu0 0
        %1024 = vmatmul.mubr.bf16.gmra.mxu0 %v986
        %v1025 = vpop.f32.mrf.mxu0
        %v1026 = vadd.f32 0.0, %v1025
        %v1027 = vpop.f32.mrf.mxu0
        %v1028 = vpop.f32.mrf.mxu0
        %v1029 = vpop.f32.mrf.mxu0
        %1030 = vdwg.mxu0
        %1031 = vrot.lane.b32.xlu0 %v575, 104
        %v1032 = vpop.permute.xlu0 %1031
        %1033 = vrot.lane.b32.xlu0 %v635, 104
        %v1034 = vpop.permute.xlu0 %1033
        %v1036 = vsel %vm702, %v1032, 0
        %v1039 = vsel %vm702, %v1034, 0
        %1041 = vmatprep.subr.bf16.mxu0 0
        %1042 = vmatpush1.bf16.xpose.msra.mxu0 0
        %1043 = vmatprep.subr.bf16.mxu0 0
        %1044 = vmatpush1.bf16.xpose.msra.mxu0 0
        %1045 = vmatprep.subr.bf16.mxu0 0
        %1046 = vmatpush1.bf16.xpose.msra.mxu0 0
        %1047 = vmatprep.subr.bf16.mxu0 0
        %1048 = vmatpush1.bf16.xpose.msra.mxu0 0
        %1049 = vmatprep.subr.bf16.mxu0 0
        %1050 = vmatpush1.bf16.xpose.msra.mxu0 0
        %1051 = vmatprep.subr.bf16.mxu0 0
        %1052 = vmatpush1.bf16.xpose.msra.mxu0 0
        %1053 = vmatprep.subr.bf16.mxu0 0
        %1054 = vmatpush1.bf16.xpose.msra.mxu0 0
        %1055 = vmatprep.subr.bf16.mxu0 0
        %1056 = vmatpush1.bf16.xpose.msra.mxu0 %v1039
        %1057 = vmatprep.subr.bf16.mxu0 0
        %1058 = vmatpush2.bf16.xpose.msra.mxu0 0
        %1059 = vmatprep.subr.bf16.mxu0 0
        %1060 = vmatpush2.bf16.xpose.msra.mxu0 0
        %1061 = vmatprep.subr.bf16.mxu0 0
        %1062 = vmatpush2.bf16.xpose.msra.mxu0 0
        %1063 = vmatprep.subr.bf16.mxu0 0
        %1064 = vmatpush2.bf16.xpose.msra.mxu0 0
        %1065 = vmatprep.subr.bf16.mxu0 0
        %1066 = vmatpush2.bf16.xpose.msra.mxu0 0
        %1067 = vmatprep.subr.bf16.mxu0 0
        %1068 = vmatpush2.bf16.xpose.msra.mxu0 0
        %1069 = vmatprep.subr.bf16.mxu0 0
        %1070 = vmatpush2.bf16.xpose.msra.mxu0 0
        %1071 = vmatprep.subr.bf16.mxu0 0
        %1072 = vmatpush2.bf16.xpose.msra.mxu0 0
        %1073 = vmatprep.mubr.bf16.mxu0 0
        %1074 = vmatmul.mubr.bf16.gmra.mxu0 %v1036
        %v1075 = vpop.f32.mrf.mxu0
        %v1076 = vadd.f32 0.0, %v1075
        %v1077 = vpop.f32.mrf.mxu0
        %v1078 = vpop.f32.mrf.mxu0
        %v1079 = vpop.f32.mrf.mxu0
        %1080 = vdwg.mxu0
        %v1081 = vsel %vm702, %v1076, -inf
        %1082 = vmax.xlane.f32.xlu0 %v1081
        %v1083 = vpop.xlane.xlu0 %1082
        %v1084 = vsub.f32 %v1076, %v1083
        %v1085 = vmul.f32 %v1084, 1.442695
        %v1086 = vpow.pop %v1085
        %v1087 = vsel %vm702, %v1086, 0.0
        %1088 = vadd.xlane.f32.xlu0 %v1087
        %v1089 = vpop.xlane.xlu0 %1088
        %v1090 = vrcp.pop %v1089
        %v1091 = vmul.f32 %v1086, %v1090
        %v1092 = vpack.c.bf16 %v1091, %v1091
        %1093 = vrot.lane.b32.xlu0 %v701, 104
        %v1094 = vpop.permute.xlu0 %1093
        %v1096 = vsel %vm702, %v1092, 0
        %v1099 = vsel %vm764, %v1094, 0
        %1101 = vmatprep.subr.bf16.mxu0 0
        %1102 = vmatpush1.bf16.msra.mxu0 0
        %1103 = vmatprep.subr.bf16.mxu0 0
        %1104 = vmatpush1.bf16.msra.mxu0 0
        %1105 = vmatprep.subr.bf16.mxu0 0
        %1106 = vmatpush1.bf16.msra.mxu0 0
        %1107 = vmatprep.subr.bf16.mxu0 0
        %1108 = vmatpush1.bf16.msra.mxu0 0
        %1109 = vmatprep.subr.bf16.mxu0 0
        %1110 = vmatpush1.bf16.msra.mxu0 0
        %1111 = vmatprep.subr.bf16.mxu0 0
        %1112 = vmatpush1.bf16.msra.mxu0 0
        %1113 = vmatprep.subr.bf16.mxu0 0
        %1114 = vmatpush1.bf16.msra.mxu0 0
        %1115 = vmatprep.subr.bf16.mxu0 0
        %1116 = vmatpush1.bf16.msra.mxu0 %v1099
        %1117 = vmatprep.subr.bf16.mxu0 0
        %1118 = vmatpush2.bf16.msra.mxu0 0
        %1119 = vmatprep.subr.bf16.mxu0 0
        %1120 = vmatpush2.bf16.msra.mxu0 0
        %1121 = vmatprep.subr.bf16.mxu0 0
        %1122 = vmatpush2.bf16.msra.mxu0 0
        %1123 = vmatprep.subr.bf16.mxu0 0
        %1124 = vmatpush2.bf16.msra.mxu0 0
        %1125 = vmatprep.subr.bf16.mxu0 0
        %1126 = vmatpush2.bf16.msra.mxu0 0
        %1127 = vmatprep.subr.bf16.mxu0 0
        %1128 = vmatpush2.bf16.msra.mxu0 0
        %1129 = vmatprep.subr.bf16.mxu0 0
        %1130 = vmatpush2.bf16.msra.mxu0 0
        %1131 = vmatprep.subr.bf16.mxu0 0
        %1132 = vmatpush2.bf16.msra.mxu0 0
        %1133 = vmatprep.mubr.bf16.mxu0 0
        %1134 = vmatmul.mubr.bf16.gmra.mxu0 %v1096
        %v1135 = vpop.f32.mrf.mxu0
        %v1136 = vadd.f32 0.0, %v1135
        %v1137 = vpop.f32.mrf.mxu0
        %v1138 = vpop.f32.mrf.mxu0
        %v1139 = vpop.f32.mrf.mxu0
        %1140 = vdwg.mxu0
        %1142 = vrot.lane.b32.xlu0 %v916, 8
        %v1143 = vpop.permute.xlu0 %1142
        %1146 = vrot.lane.b32.xlu0 %v1026, 16
        %v1147 = vpop.permute.xlu0 %1146
        %1150 = vrot.lane.b32.xlu0 %v1136, 24
        %v1151 = vpop.permute.xlu0 %1150
        %v1153 = vsel %vm702, %v803, %v1143
        %vm1154 = vcmask 130048
        %v1155 = vsel %vm1154, %v1153, %v1147
        %vm1156 = vcmask 195584
        %v1157 = vsel %vm1156, %v1155, %v1151
        %v1158 = vpack.c.bf16 %v1157, %v1157
        %v1159 = vld [vmem:[#allocation13] sm:$0xf]
        %v1160 = vld [vmem:[#allocation13 + $0x4] sm:$0xf]
        %v1161 = vld [vmem:[#allocation13 + $0x8] sm:$0xf]
        %v1162 = vld [vmem:[#allocation13 + $0xc] sm:$0xf]
        %v1163 = vld [vmem:[%s9] sm:$0x1]
        %v1164 = vunpack.c.l.bf16 %v1163
        %v1165 = vlaneseq
        %v1166 = vshrl.u32 %v1165, 7
        %v1167 = vsub.s32 0, %v1166
        %v1168 = vrot.slane %v1164, %v1167
        %v1173 = vunpack.c.l.b16 %v1159
        %v1174 = vunpack.c.l.b16 %v1160
        %v1175 = vunpack.c.l.b16 %v1161
        %v1176 = vunpack.c.l.b16 %v1162
        %v1177 = vpack.c.b16 %v1174, %v1173
        %v1178 = vpack.c.b16 %v1176, %v1175
        %v1182 = vsel %vm530, %v1158, 0
        %1184 = vmatprep.subr.bf16.mxu0 0
        %1185 = vmatpush1.bf16.msra.mxu0 0
        %1186 = vmatprep.subr.bf16.mxu0 0
        %1187 = vmatpush1.bf16.msra.mxu0 0
        %1188 = vmatprep.subr.bf16.mxu0 0
        %1189 = vmatpush1.bf16.msra.mxu0 0
        %1190 = vmatprep.subr.bf16.mxu0 0
        %1191 = vmatpush1.bf16.msra.mxu0 0
        %1192 = vmatprep.subr.bf16.mxu0 0
        %1193 = vmatpush1.bf16.msra.mxu0 0
        %1194 = vmatprep.subr.bf16.mxu0 0
        %1195 = vmatpush1.bf16.msra.mxu0 0
        %1196 = vmatprep.subr.bf16.mxu0 0
        %1197 = vmatpush1.bf16.msra.mxu0 %v1178
        %1198 = vmatprep.subr.bf16.mxu0 0
        %1199 = vmatpush1.bf16.msra.mxu0 %v1177
        %1200 = vmatprep.subr.bf16.mxu0 0
        %1201 = vmatpush2.bf16.msra.mxu0 0
        %1202 = vmatprep.subr.bf16.mxu0 0
        %1203 = vmatpush2.bf16.msra.mxu0 0
        %1204 = vmatprep.subr.bf16.mxu0 0
        %1205 = vmatpush2.bf16.msra.mxu0 0
        %1206 = vmatprep.subr.bf16.mxu0 0
        %1207 = vmatpush2.bf16.msra.mxu0 0
        %1208 = vmatprep.subr.bf16.mxu0 0
        %1209 = vmatpush2.bf16.msra.mxu0 0
        %1210 = vmatprep.subr.bf16.mxu0 0
        %1211 = vmatpush2.bf16.msra.mxu0 0
        %1212 = vmatprep.subr.bf16.mxu0 0
        %1213 = vmatpush2.bf16.msra.mxu0 0
        %1214 = vmatprep.subr.bf16.mxu0 0
        %1215 = vmatpush2.bf16.msra.mxu0 0
        %1216 = vmatprep.mubr.bf16.mxu0 0
        %1217 = vmatmul.mubr.bf16.gmra.mxu0 %v1182
        %v1218 = vpop.f32.mrf.mxu0
        %v1219 = vadd.f32 %v1168, %v1218
        %v1220 = vpop.f32.mrf.mxu0
        %v1221 = vpop.f32.mrf.mxu0
        %v1222 = vpop.f32.mrf.mxu0
        %1223 = vdwg.mxu0
        %v1224 = vpack.c.bf16 %v1219, %v1219
        %vm1225 = vcmask 257024
        %1226 = vst.msk [vmem:[%s503] sm:$0xf] %vm1225, %v1224
        %s1227 = sand.u32 %s265, 1
        %s1228 = scalar_lea.sflag [#allocation4], %s1227
        %s1229 = sand.u32 %s265, 1
        %s1230 = smul.addr %s1229, 4
        %s1231 = scalar_lea.vmem [#allocation14], %s1230
        // Predicated region
        $region89: #{tpu_custom_call.1} parent=59 // pred_check
          %p1232 = pneg %p275
        $region90: #{tpu_custom_call.1} parent=59 // pred_check_branch
          %1234 = sbr.rel (%p1232) target = $region92
        $region91: #{tpu_custom_call.1} parent=59 // pred_region
          %s1236 = ssub.s32 64, 64
          %1237 = vsyncadd %s1228, %s1236
          %s1238 = smul.addr %s32, 64
          %s1239 = scalar_lea.hbm %s10, %s1238
          %s1241 = sshll.u32 %s1231, 4
          %s1242 = int_to_ptr.vmem [resolvable:$true] %s1241
          %1244 = dma.vmem_to_hbm [thread:$0]  %s1242, 64, %s1239, %s1228
        $region92: #{tpu_custom_call.1} parent=59 // pred_fallthru
          _
      $region60: #{tpu_custom_call.1} parent=5 // pred_fallthru
        _
      %p1245 = scmp.le.s32.totalorder 2, %s27
      // Predicated region
      $region93: #{tpu_custom_call.1} parent=5 // pred_check
        %p1246 = pneg %p1245
      $region94: #{tpu_custom_call.1} parent=5 // pred_check_branch
        %1248 = sbr.rel (%p1246) target = $region96
      $region95: #{tpu_custom_call.1} parent=5 // pred_region
        %s1249 = ssub.s32 %s27, 2
        // Predicated region
        $region97: #{tpu_custom_call.1} parent=95 // pred_check
          %p1250 = pneg %p281
        $region98: #{tpu_custom_call.1} parent=95 // pred_check_branch
          %1252 = sbr.rel (%p1250) target = $region100
        $region99: #{tpu_custom_call.1} parent=95 // pred_region
          %s1253 = sand.u32 %s266, 1
          %s1254 = scalar_lea.sflag [#allocation4], %s1253
          %s1255 = sand.u32 %s266, 1
          %s1256 = smul.addr %s1255, 4
          %s1257 = scalar_lea.vmem [#allocation14], %s1256
          %1258 = dma.done %s1254, 64
        $region100: #{tpu_custom_call.1} parent=95 // pred_fallthru
          _
      $region96: #{tpu_custom_call.1} parent=5 // pred_fallthru
        _
    $region6: #{tpu_custom_call.1} parent=1 // loop_footer
      %s31 = sadd.s32 1, %s27
    $region7: #{tpu_custom_call.1} parent=1 // loop_footer_branch
      %26 = sbr.rel target = $region3
    $region8: #{tpu_custom_call.1} parent=1 // loop_exit
      _
    %1259 = vsyncpa [#allocation3], 1
    %s1260 = scalar_lea.sflag [#allocation3], 1
    %1261 = vsyncpa %s1260, 1
    %1262 = vsyncpa [#allocation6], 1
    %s1263 = scalar_lea.sflag [#allocation6], 1
    %1264 = vsyncpa %s1263, 1
    %1265 = vsyncpa [#allocation9], 1
    %1266 = vsyncpa [#allocation12], 1
    %1267 = vsyncpa [#allocation4], 1
    %s1268 = scalar_lea.sflag [#allocation4], 1
    %1269 = vsyncpa %s1268, 1

</llo_original>
